<compile_context>
chip_gen: v6e
topology: v6e:2x2x1
jax: 0.10.0
libtpu: 0.0.40
codegen_flags: <defaults>
</compile_context>

<pallas_src>
import functools

import jax
import jax.numpy as jnp
from jax.experimental import pallas as pl
from jax.experimental.pallas import tpu as pltpu


# --------------------------------------------------------------------------
# Kernel 1: LSTM recurrence (seq-major), emits hidden states per time-step.
# --------------------------------------------------------------------------
def _lstm_kernel(x_ref, wih_ref, whh_ref, b_ref, hs_ref, h_sc, c_sc,
                 *, k_steps, hidden):
    """Processes `k_steps` LSTM time-steps for one batch tile.

    x_ref  : (K, tb, E)  bf16   input slice (seq-major)
    wih_ref: (E, 4H)     bf16   W_ih^T  (gate order i, f, g, o)
    whh_ref: (H, 4H)     bf16   W_hh^T
    b_ref  : (1, 4H)     f32    b_ih + b_hh
    hs_ref : (K, tb, H)  bf16   per-step hidden states (output)
    h_sc, c_sc : (tb, H) f32    recurrent state, persists across seq grid steps
    """
    s_blk = pl.program_id(1)            # seq-block index (innermost, "arbitrary")

    @pl.when(s_blk == 0)
    def _():
        h_sc[...] = jnp.zeros_like(h_sc)
        c_sc[...] = jnp.zeros_like(c_sc)

    wih = wih_ref[...]                  # (E, 4H) bf16 — resident across the loop
    whh = whh_ref[...]                  # (H, 4H) bf16
    b = b_ref[...]                      # (1, 4H) f32

    h = h_sc[...]                       # (tb, H) f32
    c = c_sc[...]                       # (tb, H) f32

    H = hidden
    # Statically unrolled K-step inner loop (K is a compile-time constant).
    for k in range(k_steps):
        x = x_ref[k]                    # (tb, E) bf16
        gates = (jnp.dot(x, wih, preferred_element_type=jnp.float32)
                 + jnp.dot(h.astype(jnp.bfloat16), whh,
                           preferred_element_type=jnp.float32)
                 + b)                   # (tb, 4H) f32
        # Gate slices are lane-aligned when H % 128 == 0.
        i_g = jax.nn.sigmoid(gates[:, 0 * H:1 * H])
        f_g = jax.nn.sigmoid(gates[:, 1 * H:2 * H])
        g_g = jnp.tanh(gates[:, 2 * H:3 * H])
        o_g = jax.nn.sigmoid(gates[:, 3 * H:4 * H])
        c = f_g * c + i_g * g_g
        h = o_g * jnp.tanh(c)
        hs_ref[k] = h.astype(hs_ref.dtype)

    h_sc[...] = h
    c_sc[...] = c


def lstm_hidden_states(x, w_ih_t, w_hh_t, b_gates, *, k_steps=None, tb=None):
    """x: (S, Tb, E) bf16 seq-major LSTM input. Returns hidden states (S, Tb, H) bf16."""
    S, Tb, E = x.shape
    H = w_hh_t.shape[0]

    if k_steps is None or S % k_steps != 0:
        k_steps = S
    if tb is None or Tb % tb != 0:
        tb = Tb

    kernel = functools.partial(_lstm_kernel, k_steps=k_steps, hidden=H)

    return pl.pallas_call(
        kernel,
        out_shape=jax.ShapeDtypeStruct((S, Tb, H), jnp.bfloat16),
        grid_spec=pltpu.PrefetchScalarGridSpec(
            num_scalar_prefetch=0,
            # Leading batch-tile axis is independent ("parallel", feeds v7x's
            # 2nd TC); seq axis is the recurrence ("arbitrary"), innermost.
            grid=(Tb // tb, S // k_steps),
            in_specs=[
                pl.BlockSpec((k_steps, tb, E), lambda b, s: (s, b, 0)),  # x slice
                # Constant-index weights: DMA'd once, stay resident.
                # (Could be single-buffered via pipeline_mode=pl.Buffered(1) to
                #  halve weight VMEM on v7x's 64 MiB; irrelevant at these sizes.)
                pl.BlockSpec((E, 4 * H), lambda b, s: (0, 0)),           # W_ih^T
                pl.BlockSpec((H, 4 * H), lambda b, s: (0, 0)),           # W_hh^T
                pl.BlockSpec((1, 4 * H), lambda b, s: (0, 0)),           # bias
            ],
            out_specs=pl.BlockSpec((k_steps, tb, H), lambda b, s: (s, b, 0)),
            scratch_shapes=[
                pltpu.VMEM((tb, H), jnp.float32),   # h state (f32)
                pltpu.VMEM((tb, H), jnp.float32),   # c state (f32)
            ],
        ),
        compiler_params=pltpu.CompilerParams(
            dimension_semantics=("parallel", "arbitrary"),
        ),
    )(x, w_ih_t, w_hh_t, b_gates)


# --------------------------------------------------------------------------
# Kernel 2: batched vocab projection  (S*Tb, H) @ (H, V) + b   (all the FLOPs)
# --------------------------------------------------------------------------
def _proj_kernel(h_ref, w_ref, b_ref, o_ref, acc_ref):
    @pl.when(pl.program_id(2) == 0)
    def _():
        acc_ref[...] = jnp.zeros_like(acc_ref)

    acc_ref[...] += jnp.dot(h_ref[...], w_ref[...],
                            preferred_element_type=jnp.float32)

    @pl.when(pl.program_id(2) == pl.num_programs(2) - 1)
    def _():
        o_ref[...] = acc_ref[...] + b_ref[...]


def _fit(dim, pref):
    """Largest convenient tile: `pref` if it divides `dim`, else the full dim."""
    return pref if dim % pref == 0 else dim


def vocab_projection(h2d, w_lin_t, b_lin):
    """h2d: (M, H) bf16, w_lin_t: (H, V) bf16, b_lin: (1, V) f32 -> (M, V) f32."""
    M, H = h2d.shape
    V = w_lin_t.shape[1]
    tm = _fit(M, 256)
    tn = _fit(V, 256)
    tk = _fit(H, 512)

    return pl.pallas_call(
        _proj_kernel,
        out_shape=jax.ShapeDtypeStruct((M, V), jnp.float32),
        grid_spec=pltpu.PrefetchScalarGridSpec(
            num_scalar_prefetch=0,
            grid=(M // tm, V // tn, H // tk),
            in_specs=[
                pl.BlockSpec((tm, tk), lambda i, j, k: (i, k)),
                pl.BlockSpec((tk, tn), lambda i, j, k: (k, j)),
                pl.BlockSpec((1, tn), lambda i, j, k: (0, j)),
            ],
            out_specs=pl.BlockSpec((tm, tn), lambda i, j, k: (i, j)),
            scratch_shapes=[pltpu.VMEM((tm, tn), jnp.float32)],
        ),
        compiler_params=pltpu.CompilerParams(
            dimension_semantics=("parallel", "parallel", "arbitrary"),
        ),
    )(h2d, w_lin_t, b_lin)


# --------------------------------------------------------------------------
# Wrapper: exact forward() semantics of the PyTorch DecoderRNN.
# --------------------------------------------------------------------------
def decoder_forward(params, features, captions, *, k_steps=None):
    """features: (B, E) f32, captions: (B, T) int32 -> (B, T, V) f32."""
    # Embedding lookup + concat (glue) in plain JAX.
    # TODO(synk): fuse this gather into the LSTM kernel via scalar-prefetched
    # caption ids + a pl.Element row-gather BlockSpec on the embedding table to
    # avoid materializing (B, T, E) in HBM.
    emb = jnp.take(params["embedding"], captions[:, :-1], axis=0)   # (B, T-1, E)
    inputs = jnp.concatenate([features[:, None, :], emb], axis=1)   # (B, T, E)

    # nn.LSTM with batch_first=False: dim0 (B) is the seq axis -> feed as-is.
    x = inputs.astype(jnp.bfloat16)
    w_ih_t = params["w_ih"].T.astype(jnp.bfloat16)                  # (E, 4H)
    w_hh_t = params["w_hh"].T.astype(jnp.bfloat16)                  # (H, 4H)
    b_gates = (params["b_ih"] + params["b_hh"])[None, :].astype(jnp.float32)
    w_lin_t = params["w_lin"].T.astype(jnp.bfloat16)                # (H, V)
    b_lin = params["b_lin"][None, :].astype(jnp.float32)            # (1, V)

    S, Tb, _ = x.shape
    H = params["w_hh"].shape[1]
    V = params["w_lin"].shape[0]

    hs = lstm_hidden_states(x, w_ih_t, w_hh_t, b_gates, k_steps=k_steps)  # (S,Tb,H)
    logits = vocab_projection(hs.reshape(S * Tb, H), w_lin_t, b_lin)      # (S*Tb,V)
    return logits.reshape(S, Tb, V)


# --------------------------------------------------------------------------
# Pure-JAX f32 reference (mirrors PyTorch semantics) for a sanity check.
# --------------------------------------------------------------------------
def _reference_forward(params, features, captions):
    emb = jnp.take(params["embedding"], captions[:, :-1], axis=0)
    inputs = jnp.concatenate([features[:, None, :], emb], axis=1)   # (S, Tb, E)
    H = params["w_hh"].shape[1]
    w_ih_t, w_hh_t = params["w_ih"].T, params["w_hh"].T
    b = params["b_ih"] + params["b_hh"]

    def step(carry, x_t):
        h, c = carry
        g = x_t @ w_ih_t + h @ w_hh_t + b
        i = jax.nn.sigmoid(g[:, 0 * H:1 * H])
        f = jax.nn.sigmoid(g[:, 1 * H:2 * H])
        gg = jnp.tanh(g[:, 2 * H:3 * H])
        o = jax.nn.sigmoid(g[:, 3 * H:4 * H])
        c = f * c + i * gg
        h = o * jnp.tanh(c)
        return (h, c), h

    Tb = inputs.shape[1]
    h0 = jnp.zeros((Tb, H), jnp.float32)
    _, hs = jax.lax.scan(step, (h0, h0), inputs)
    return hs @ params["w_lin"].T + params["b_lin"]


def init_params(key, embed_size, hidden_size, vocab_size):
    ks = jax.random.split(key, 7)
    bound = 1.0 / jnp.sqrt(hidden_size)
    u = lambda k, shape: jax.random.uniform(k, shape, jnp.float32, -bound, bound)
    return {
        "embedding": jax.random.normal(ks[0], (vocab_size, embed_size), jnp.float32),
        "w_ih": u(ks[1], (4 * hidden_size, embed_size)),
        "w_hh": u(ks[2], (4 * hidden_size, hidden_size)),
        "b_ih": u(ks[3], (4 * hidden_size,)),
        "b_hh": u(ks[4], (4 * hidden_size,)),
        "w_lin": u(ks[5], (vocab_size, hidden_size)),
        "b_lin": u(ks[6], (vocab_size,)),
    }


# TODO(synk): sample() (multinomial decoding loop) is inference-only and not part
# of forward(); not implemented as a kernel.

if __name__ == "__main__":
    # Lane/sublane-dense small shapes: E = H = 128, V = 256, B = T = 8.
    EMBED, HIDDEN, VOCAB = 128, 128, 256
    B, T = 8, 8   # B = LSTM seq length (batch_first=False), T = LSTM batch

    key = jax.random.PRNGKey(0)
    pkey, fkey, ckey = jax.random.split(key, 3)
    params = init_params(pkey, EMBED, HIDDEN, VOCAB)

    features = jax.random.normal(fkey, (B, EMBED), jnp.float32)
    captions = jax.random.randint(ckey, (B, T), 0, VOCAB, dtype=jnp.int32)

    # k_steps=4 -> 2 seq grid steps, exercising the cross-step h/c state carry.
    out = decoder_forward(params, features, captions, k_steps=4)
    out = jax.block_until_ready(out)

    ref = jax.block_until_ready(_reference_forward(params, features, captions))
    assert out.shape == (B, T, VOCAB), out.shape
    # bf16 MXU inputs (f32 accumulation/state) vs f32 reference -> loose tolerance.
    max_err = float(jnp.max(jnp.abs(out - ref)))
    assert jnp.allclose(out, ref, atol=5e-2, rtol=5e-2), (
        f"mismatch vs JAX reference (max |err| = {max_err})")

    print("KERNEL_OK")
</pallas_src>

<mosaic_0001>
module attributes {stable_mosaic.version = 11 : i64} {
  func.func @_lstm_kernel(%arg0: i32, %arg1: i32, %arg2: memref<4x8x128xbf16, #tpu.memory_space<vmem>>, %arg3: memref<128x512xbf16, #tpu.memory_space<vmem>>, %arg4: memref<128x512xbf16, #tpu.memory_space<vmem>>, %arg5: memref<1x512xf32, #tpu.memory_space<vmem>>, %arg6: memref<4x8x128xbf16, #tpu.memory_space<vmem>>, %arg7: memref<8x128xf32, #tpu.memory_space<vmem>>, %arg8: memref<8x128xf32, #tpu.memory_space<vmem>>) attributes {dimension_semantics = [#tpu.dimension_semantics<parallel>, #tpu.dimension_semantics<arbitrary>], iteration_bounds = array<i64: 1, 2>, scalar_prefetch = 0 : i64, scratch_operands = 2 : i64, tpu.core_type = #tpu.core_type<tc>, window_params = [{transform_indices = @transform_0, window_bounds = array<i64: 4, 8, 128>}, {pipeline_mode = #tpu.pipeline_mode<synchronous>, transform_indices = @transform_1, window_bounds = array<i64: 128, 512>}, {pipeline_mode = #tpu.pipeline_mode<synchronous>, transform_indices = @transform_2, window_bounds = array<i64: 128, 512>}, {pipeline_mode = #tpu.pipeline_mode<synchronous>, transform_indices = @transform_3, window_bounds = array<i64: 1, 512>}, {transform_indices = @transform_4, window_bounds = array<i64: 4, 8, 128>}]} {
    %c0_i32 = arith.constant 0 : i32
    %0 = arith.cmpi eq, %arg1, %c0_i32 : i32
    %1 = arith.extui %0 : i1 to i32
    %c0_i32_0 = arith.constant 0 : i32
    %2 = arith.cmpi ne, %1, %c0_i32_0 : i32
    scf.if %2 {
      %cst_54 = arith.constant 0.000000e+00 : f32
      %158 = vector.broadcast %cst_54 : f32 to vector<8x128xf32>
      %c0_55 = arith.constant 0 : index
      %c0_56 = arith.constant 0 : index
      %159 = vector.load %arg7[%c0_55, %c0_56] : memref<8x128xf32, #tpu.memory_space<vmem>>, vector<8x128xf32>
      tpu.vector_store %arg7[%c0_55, %c0_56], %158 {strides = array<i32>} : memref<8x128xf32, #tpu.memory_space<vmem>>, vector<8x128xf32>,
      %cst_57 = arith.constant 0.000000e+00 : f32
      %160 = vector.broadcast %cst_57 : f32 to vector<8x128xf32>
      %c0_58 = arith.constant 0 : index
      %c0_59 = arith.constant 0 : index
      %161 = vector.load %arg8[%c0_58, %c0_59] : memref<8x128xf32, #tpu.memory_space<vmem>>, vector<8x128xf32>
      tpu.vector_store %arg8[%c0_58, %c0_59], %160 {strides = array<i32>} : memref<8x128xf32, #tpu.memory_space<vmem>>, vector<8x128xf32>,
    } else {
    }
    %c0 = arith.constant 0 : index
    %c0_1 = arith.constant 0 : index
    %3 = vector.load %arg3[%c0, %c0_1] : memref<128x512xbf16, #tpu.memory_space<vmem>>, vector<128x512xbf16>
    %c0_2 = arith.constant 0 : index
    %c0_3 = arith.constant 0 : index
    %4 = vector.load %arg4[%c0_2, %c0_3] : memref<128x512xbf16, #tpu.memory_space<vmem>>, vector<128x512xbf16>
    %c0_4 = arith.constant 0 : index
    %c0_5 = arith.constant 0 : index
    %5 = vector.load %arg5[%c0_4, %c0_5] : memref<1x512xf32, #tpu.memory_space<vmem>>, vector<1x512xf32>
    %c0_6 = arith.constant 0 : index
    %c0_7 = arith.constant 0 : index
    %6 = vector.load %arg7[%c0_6, %c0_7] : memref<8x128xf32, #tpu.memory_space<vmem>>, vector<8x128xf32>
    %c0_8 = arith.constant 0 : index
    %c0_9 = arith.constant 0 : index
    %7 = vector.load %arg8[%c0_8, %c0_9] : memref<8x128xf32, #tpu.memory_space<vmem>>, vector<8x128xf32>
    %c0_10 = arith.constant 0 : index
    %c0_11 = arith.constant 0 : index
    %c0_12 = arith.constant 0 : index
    %8 = vector.load %arg2[%c0_10, %c0_11, %c0_12] : memref<4x8x128xbf16, #tpu.memory_space<vmem>>, vector<1x8x128xbf16>
    %9 = vector.shape_cast %8 : vector<1x8x128xbf16> to vector<8x128xbf16>
    %cst = arith.constant dense<0.000000e+00> : vector<8x512xf32>
    %10 = tpu.matmul %9, %3, %cst {dimension_numbers = #tpu.dot_dimension_numbers<[1], [0], [0], [1], [0, 0, 1, 1], [], []>} : vector<8x128xbf16>, vector<128x512xbf16>, vector<8x512xf32> -> vector<8x512xf32>
    %11 = arith.truncf %6 : vector<8x128xf32> to vector<8x128xbf16>
    %cst_13 = arith.constant dense<0.000000e+00> : vector<8x512xf32>
    %12 = tpu.matmul %11, %4, %cst_13 {dimension_numbers = #tpu.dot_dimension_numbers<[1], [0], [0], [1], [0, 0, 1, 1], [], []>} : vector<8x128xbf16>, vector<128x512xbf16>, vector<8x512xf32> -> vector<8x512xf32>
    %13 = arith.addf %10, %12 : vector<8x512xf32>
    %14 = vector.broadcast %5 : vector<1x512xf32> to vector<8x512xf32>
    %15 = arith.addf %13, %14 : vector<8x512xf32>
    %16 = vector.extract_strided_slice %15 {offsets = [0, 0], sizes = [8, 128], strides = [1, 1]} : vector<8x512xf32> to vector<8x128xf32>
    %17 = arith.negf %16 : vector<8x128xf32>
    %18 = math.exp %17 : vector<8x128xf32>
    %cst_14 = arith.constant 1.000000e+00 : f32
    %19 = vector.broadcast %cst_14 : f32 to vector<8x128xf32>
    %20 = arith.addf %19, %18 : vector<8x128xf32>
    %21 = arith.divf %19, %20 : vector<8x128xf32>
    %22 = vector.extract_strided_slice %15 {offsets = [0, 128], sizes = [8, 128], strides = [1, 1]} : vector<8x512xf32> to vector<8x128xf32>
    %23 = arith.negf %22 : vector<8x128xf32>
    %24 = math.exp %23 : vector<8x128xf32>
    %cst_15 = arith.constant 1.000000e+00 : f32
    %25 = vector.broadcast %cst_15 : f32 to vector<8x128xf32>
    %26 = arith.addf %25, %24 : vector<8x128xf32>
    %27 = arith.divf %25, %26 : vector<8x128xf32>
    %28 = vector.extract_strided_slice %15 {offsets = [0, 256], sizes = [8, 128], strides = [1, 1]} : vector<8x512xf32> to vector<8x128xf32>
    %29 = math.tanh %28 : vector<8x128xf32>
    %30 = vector.extract_strided_slice %15 {offsets = [0, 384], sizes = [8, 128], strides = [1, 1]} : vector<8x512xf32> to vector<8x128xf32>
    %31 = arith.negf %30 : vector<8x128xf32>
    %32 = math.exp %31 : vector<8x128xf32>
    %cst_16 = arith.constant 1.000000e+00 : f32
    %33 = vector.broadcast %cst_16 : f32 to vector<8x128xf32>
    %34 = arith.addf %33, %32 : vector<8x128xf32>
    %35 = arith.divf %33, %34 : vector<8x128xf32>
    %36 = arith.mulf %27, %7 : vector<8x128xf32>
    %37 = arith.mulf %21, %29 : vector<8x128xf32>
    %38 = arith.addf %36, %37 : vector<8x128xf32>
    %39 = math.tanh %38 : vector<8x128xf32>
    %40 = arith.mulf %35, %39 : vector<8x128xf32>
    %41 = arith.truncf %40 : vector<8x128xf32> to vector<8x128xbf16>
    %c0_17 = arith.constant 0 : index
    %c0_18 = arith.constant 0 : index
    %c0_19 = arith.constant 0 : index
    %42 = vector.load %arg6[%c0_17, %c0_18, %c0_19] : memref<4x8x128xbf16, #tpu.memory_space<vmem>>, vector<1x8x128xbf16>
    %43 = vector.shape_cast %42 : vector<1x8x128xbf16> to vector<8x128xbf16>
    %44 = vector.shape_cast %41 : vector<8x128xbf16> to vector<1x8x128xbf16>
    tpu.vector_store %arg6[%c0_17, %c0_18, %c0_19], %44 {strides = array<i32>} : memref<4x8x128xbf16, #tpu.memory_space<vmem>>, vector<1x8x128xbf16>,
    %c1 = arith.constant 1 : index
    %c0_20 = arith.constant 0 : index
    %c0_21 = arith.constant 0 : index
    %45 = vector.load %arg2[%c1, %c0_20, %c0_21] : memref<4x8x128xbf16, #tpu.memory_space<vmem>>, vector<1x8x128xbf16>
    %46 = vector.shape_cast %45 : vector<1x8x128xbf16> to vector<8x128xbf16>
    %cst_22 = arith.constant dense<0.000000e+00> : vector<8x512xf32>
    %47 = tpu.matmul %46, %3, %cst_22 {dimension_numbers = #tpu.dot_dimension_numbers<[1], [0], [0], [1], [0, 0, 1, 1], [], []>} : vector<8x128xbf16>, vector<128x512xbf16>, vector<8x512xf32> -> vector<8x512xf32>
    %48 = arith.truncf %40 : vector<8x128xf32> to vector<8x128xbf16>
    %cst_23 = arith.constant dense<0.000000e+00> : vector<8x512xf32>
    %49 = tpu.matmul %48, %4, %cst_23 {dimension_numbers = #tpu.dot_dimension_numbers<[1], [0], [0], [1], [0, 0, 1, 1], [], []>} : vector<8x128xbf16>, vector<128x512xbf16>, vector<8x512xf32> -> vector<8x512xf32>
    %50 = arith.addf %47, %49 : vector<8x512xf32>
    %51 = vector.broadcast %5 : vector<1x512xf32> to vector<8x512xf32>
    %52 = arith.addf %50, %51 : vector<8x512xf32>
    %53 = vector.extract_strided_slice %52 {offsets = [0, 0], sizes = [8, 128], strides = [1, 1]} : vector<8x512xf32> to vector<8x128xf32>
    %54 = arith.negf %53 : vector<8x128xf32>
    %55 = math.exp %54 : vector<8x128xf32>
    %cst_24 = arith.constant 1.000000e+00 : f32
    %56 = vector.broadcast %cst_24 : f32 to vector<8x128xf32>
    %57 = arith.addf %56, %55 : vector<8x128xf32>
    %58 = arith.divf %56, %57 : vector<8x128xf32>
    %59 = vector.extract_strided_slice %52 {offsets = [0, 128], sizes = [8, 128], strides = [1, 1]} : vector<8x512xf32> to vector<8x128xf32>
    %60 = arith.negf %59 : vector<8x128xf32>
    %61 = math.exp %60 : vector<8x128xf32>
    %cst_25 = arith.constant 1.000000e+00 : f32
    %62 = vector.broadcast %cst_25 : f32 to vector<8x128xf32>
    %63 = arith.addf %62, %61 : vector<8x128xf32>
    %64 = arith.divf %62, %63 : vector<8x128xf32>
    %65 = vector.extract_strided_slice %52 {offsets = [0, 256], sizes = [8, 128], strides = [1, 1]} : vector<8x512xf32> to vector<8x128xf32>
    %66 = math.tanh %65 : vector<8x128xf32>
    %67 = vector.extract_strided_slice %52 {offsets = [0, 384], sizes = [8, 128], strides = [1, 1]} : vector<8x512xf32> to vector<8x128xf32>
    %68 = arith.negf %67 : vector<8x128xf32>
    %69 = math.exp %68 : vector<8x128xf32>
    %cst_26 = arith.constant 1.000000e+00 : f32
    %70 = vector.broadcast %cst_26 : f32 to vector<8x128xf32>
    %71 = arith.addf %70, %69 : vector<8x128xf32>
    %72 = arith.divf %70, %71 : vector<8x128xf32>
    %73 = arith.mulf %64, %38 : vector<8x128xf32>
    %74 = arith.mulf %58, %66 : vector<8x128xf32>
    %75 = arith.addf %73, %74 : vector<8x128xf32>
    %76 = math.tanh %75 : vector<8x128xf32>
    %77 = arith.mulf %72, %76 : vector<8x128xf32>
    %78 = arith.truncf %77 : vector<8x128xf32> to vector<8x128xbf16>
    %c1_27 = arith.constant 1 : index
    %c0_28 = arith.constant 0 : index
    %c0_29 = arith.constant 0 : index
    %79 = vector.load %arg6[%c1_27, %c0_28, %c0_29] : memref<4x8x128xbf16, #tpu.memory_space<vmem>>, vector<1x8x128xbf16>
    %80 = vector.shape_cast %79 : vector<1x8x128xbf16> to vector<8x128xbf16>
    %81 = vector.shape_cast %78 : vector<8x128xbf16> to vector<1x8x128xbf16>
    tpu.vector_store %arg6[%c1_27, %c0_28, %c0_29], %81 {strides = array<i32>} : memref<4x8x128xbf16, #tpu.memory_space<vmem>>, vector<1x8x128xbf16>,
    %c2 = arith.constant 2 : index
    %c0_30 = arith.constant 0 : index
    %c0_31 = arith.constant 0 : index
    %82 = vector.load %arg2[%c2, %c0_30, %c0_31] : memref<4x8x128xbf16, #tpu.memory_space<vmem>>, vector<1x8x128xbf16>
    %83 = vector.shape_cast %82 : vector<1x8x128xbf16> to vector<8x128xbf16>
    %cst_32 = arith.constant dense<0.000000e+00> : vector<8x512xf32>
    %84 = tpu.matmul %83, %3, %cst_32 {dimension_numbers = #tpu.dot_dimension_numbers<[1], [0], [0], [1], [0, 0, 1, 1], [], []>} : vector<8x128xbf16>, vector<128x512xbf16>, vector<8x512xf32> -> vector<8x512xf32>
    %85 = arith.truncf %77 : vector<8x128xf32> to vector<8x128xbf16>
    %cst_33 = arith.constant dense<0.000000e+00> : vector<8x512xf32>
    %86 = tpu.matmul %85, %4, %cst_33 {dimension_numbers = #tpu.dot_dimension_numbers<[1], [0], [0], [1], [0, 0, 1, 1], [], []>} : vector<8x128xbf16>, vector<128x512xbf16>, vector<8x512xf32> -> vector<8x512xf32>
    %87 = arith.addf %84, %86 : vector<8x512xf32>
    %88 = vector.broadcast %5 : vector<1x512xf32> to vector<8x512xf32>
    %89 = arith.addf %87, %88 : vector<8x512xf32>
    %90 = vector.extract_strided_slice %89 {offsets = [0, 0], sizes = [8, 128], strides = [1, 1]} : vector<8x512xf32> to vector<8x128xf32>
    %91 = arith.negf %90 : vector<8x128xf32>
    %92 = math.exp %91 : vector<8x128xf32>
    %cst_34 = arith.constant 1.000000e+00 : f32
    %93 = vector.broadcast %cst_34 : f32 to vector<8x128xf32>
    %94 = arith.addf %93, %92 : vector<8x128xf32>
    %95 = arith.divf %93, %94 : vector<8x128xf32>
    %96 = vector.extract_strided_slice %89 {offsets = [0, 128], sizes = [8, 128], strides = [1, 1]} : vector<8x512xf32> to vector<8x128xf32>
    %97 = arith.negf %96 : vector<8x128xf32>
    %98 = math.exp %97 : vector<8x128xf32>
    %cst_35 = arith.constant 1.000000e+00 : f32
    %99 = vector.broadcast %cst_35 : f32 to vector<8x128xf32>
    %100 = arith.addf %99, %98 : vector<8x128xf32>
    %101 = arith.divf %99, %100 : vector<8x128xf32>
    %102 = vector.extract_strided_slice %89 {offsets = [0, 256], sizes = [8, 128], strides = [1, 1]} : vector<8x512xf32> to vector<8x128xf32>
    %103 = math.tanh %102 : vector<8x128xf32>
    %104 = vector.extract_strided_slice %89 {offsets = [0, 384], sizes = [8, 128], strides = [1, 1]} : vector<8x512xf32> to vector<8x128xf32>
    %105 = arith.negf %104 : vector<8x128xf32>
    %106 = math.exp %105 : vector<8x128xf32>
    %cst_36 = arith.constant 1.000000e+00 : f32
    %107 = vector.broadcast %cst_36 : f32 to vector<8x128xf32>
    %108 = arith.addf %107, %106 : vector<8x128xf32>
    %109 = arith.divf %107, %108 : vector<8x128xf32>
    %110 = arith.mulf %101, %75 : vector<8x128xf32>
    %111 = arith.mulf %95, %103 : vector<8x128xf32>
    %112 = arith.addf %110, %111 : vector<8x128xf32>
    %113 = math.tanh %112 : vector<8x128xf32>
    %114 = arith.mulf %109, %113 : vector<8x128xf32>
    %115 = arith.truncf %114 : vector<8x128xf32> to vector<8x128xbf16>
    %c2_37 = arith.constant 2 : index
    %c0_38 = arith.constant 0 : index
    %c0_39 = arith.constant 0 : index
    %116 = vector.load %arg6[%c2_37, %c0_38, %c0_39] : memref<4x8x128xbf16, #tpu.memory_space<vmem>>, vector<1x8x128xbf16>
    %117 = vector.shape_cast %116 : vector<1x8x128xbf16> to vector<8x128xbf16>
    %118 = vector.shape_cast %115 : vector<8x128xbf16> to vector<1x8x128xbf16>
    tpu.vector_store %arg6[%c2_37, %c0_38, %c0_39], %118 {strides = array<i32>} : memref<4x8x128xbf16, #tpu.memory_space<vmem>>, vector<1x8x128xbf16>,
    %c3 = arith.constant 3 : index
    %c0_40 = arith.constant 0 : index
    %c0_41 = arith.constant 0 : index
    %119 = vector.load %arg2[%c3, %c0_40, %c0_41] : memref<4x8x128xbf16, #tpu.memory_space<vmem>>, vector<1x8x128xbf16>
    %120 = vector.shape_cast %119 : vector<1x8x128xbf16> to vector<8x128xbf16>
    %cst_42 = arith.constant dense<0.000000e+00> : vector<8x512xf32>
    %121 = tpu.matmul %120, %3, %cst_42 {dimension_numbers = #tpu.dot_dimension_numbers<[1], [0], [0], [1], [0, 0, 1, 1], [], []>} : vector<8x128xbf16>, vector<128x512xbf16>, vector<8x512xf32> -> vector<8x512xf32>
    %122 = arith.truncf %114 : vector<8x128xf32> to vector<8x128xbf16>
    %cst_43 = arith.constant dense<0.000000e+00> : vector<8x512xf32>
    %123 = tpu.matmul %122, %4, %cst_43 {dimension_numbers = #tpu.dot_dimension_numbers<[1], [0], [0], [1], [0, 0, 1, 1], [], []>} : vector<8x128xbf16>, vector<128x512xbf16>, vector<8x512xf32> -> vector<8x512xf32>
    %124 = arith.addf %121, %123 : vector<8x512xf32>
    %125 = vector.broadcast %5 : vector<1x512xf32> to vector<8x512xf32>
    %126 = arith.addf %124, %125 : vector<8x512xf32>
    %127 = vector.extract_strided_slice %126 {offsets = [0, 0], sizes = [8, 128], strides = [1, 1]} : vector<8x512xf32> to vector<8x128xf32>
    %128 = arith.negf %127 : vector<8x128xf32>
    %129 = math.exp %128 : vector<8x128xf32>
    %cst_44 = arith.constant 1.000000e+00 : f32
    %130 = vector.broadcast %cst_44 : f32 to vector<8x128xf32>
    %131 = arith.addf %130, %129 : vector<8x128xf32>
    %132 = arith.divf %130, %131 : vector<8x128xf32>
    %133 = vector.extract_strided_slice %126 {offsets = [0, 128], sizes = [8, 128], strides = [1, 1]} : vector<8x512xf32> to vector<8x128xf32>
    %134 = arith.negf %133 : vector<8x128xf32>
    %135 = math.exp %134 : vector<8x128xf32>
    %cst_45 = arith.constant 1.000000e+00 : f32
    %136 = vector.broadcast %cst_45 : f32 to vector<8x128xf32>
    %137 = arith.addf %136, %135 : vector<8x128xf32>
    %138 = arith.divf %136, %137 : vector<8x128xf32>
    %139 = vector.extract_strided_slice %126 {offsets = [0, 256], sizes = [8, 128], strides = [1, 1]} : vector<8x512xf32> to vector<8x128xf32>
    %140 = math.tanh %139 : vector<8x128xf32>
    %141 = vector.extract_strided_slice %126 {offsets = [0, 384], sizes = [8, 128], strides = [1, 1]} : vector<8x512xf32> to vector<8x128xf32>
    %142 = arith.negf %141 : vector<8x128xf32>
    %143 = math.exp %142 : vector<8x128xf32>
    %cst_46 = arith.constant 1.000000e+00 : f32
    %144 = vector.broadcast %cst_46 : f32 to vector<8x128xf32>
    %145 = arith.addf %144, %143 : vector<8x128xf32>
    %146 = arith.divf %144, %145 : vector<8x128xf32>
    %147 = arith.mulf %138, %112 : vector<8x128xf32>
    %148 = arith.mulf %132, %140 : vector<8x128xf32>
    %149 = arith.addf %147, %148 : vector<8x128xf32>
    %150 = math.tanh %149 : vector<8x128xf32>
    %151 = arith.mulf %146, %150 : vector<8x128xf32>
    %152 = arith.truncf %151 : vector<8x128xf32> to vector<8x128xbf16>
    %c3_47 = arith.constant 3 : index
    %c0_48 = arith.constant 0 : index
    %c0_49 = arith.constant 0 : index
    %153 = vector.load %arg6[%c3_47, %c0_48, %c0_49] : memref<4x8x128xbf16, #tpu.memory_space<vmem>>, vector<1x8x128xbf16>
    %154 = vector.shape_cast %153 : vector<1x8x128xbf16> to vector<8x128xbf16>
    %155 = vector.shape_cast %152 : vector<8x128xbf16> to vector<1x8x128xbf16>
    tpu.vector_store %arg6[%c3_47, %c0_48, %c0_49], %155 {strides = array<i32>} : memref<4x8x128xbf16, #tpu.memory_space<vmem>>, vector<1x8x128xbf16>,
    %c0_50 = arith.constant 0 : index
    %c0_51 = arith.constant 0 : index
    %156 = vector.load %arg7[%c0_50, %c0_51] : memref<8x128xf32, #tpu.memory_space<vmem>>, vector<8x128xf32>
    tpu.vector_store %arg7[%c0_50, %c0_51], %151 {strides = array<i32>} : memref<8x128xf32, #tpu.memory_space<vmem>>, vector<8x128xf32>,
    %c0_52 = arith.constant 0 : index
    %c0_53 = arith.constant 0 : index
    %157 = vector.load %arg8[%c0_52, %c0_53] : memref<8x128xf32, #tpu.memory_space<vmem>>, vector<8x128xf32>
    tpu.vector_store %arg8[%c0_52, %c0_53], %149 {strides = array<i32>} : memref<8x128xf32, #tpu.memory_space<vmem>>, vector<8x128xf32>,
    return
  }
  func.func @transform_0(%arg0: i32, %arg1: i32) -> (i32, i32, i32) {
    %c0_i32 = arith.constant 0 : i32
    %c0_i32_0 = arith.constant 0 : i32
    return %arg1, %arg0, %c0_i32 : i32, i32, i32
  }
  func.func @transform_1(%arg0: i32, %arg1: i32) -> (i32, i32) {
    %c0_i32 = arith.constant 0 : i32
    %c0_i32_0 = arith.constant 0 : i32
    %c0_i32_1 = arith.constant 0 : i32
    return %c0_i32, %c0_i32_0 : i32, i32
  }
  func.func @transform_2(%arg0: i32, %arg1: i32) -> (i32, i32) {
    %c0_i32 = arith.constant 0 : i32
    %c0_i32_0 = arith.constant 0 : i32
    %c0_i32_1 = arith.constant 0 : i32
    return %c0_i32, %c0_i32_0 : i32, i32
  }
  func.func @transform_3(%arg0: i32, %arg1: i32) -> (i32, i32) {
    %c0_i32 = arith.constant 0 : i32
    %c0_i32_0 = arith.constant 0 : i32
    %c0_i32_1 = arith.constant 0 : i32
    return %c0_i32, %c0_i32_0 : i32, i32
  }
  func.func @transform_4(%arg0: i32, %arg1: i32) -> (i32, i32, i32) {
    %c0_i32 = arith.constant 0 : i32
    %c0_i32_0 = arith.constant 0 : i32
    return %arg1, %arg0, %c0_i32 : i32, i32, i32
  }
}

</mosaic_0001>

<llo_original>
// kernel: tpu_custom_call.1
$region0: #{tpu_custom_call.1}
  #allocation0 [shape = 'u32[]', space=smem, size = 0x4, offset = 0x4, fixed_abs, tag = 'smem constant byte address 0x4 - core index']
  #allocation1 [shape = 'u32[144,128]{1,0:T(1,128)}', space=vmem, size = 0x12000, scoped, tag = 'internal scratch']
  #allocation2 [shape = 'f32[8,128]{1,0:T(8,128)}', space=vmem, size = 0x1000, scoped, tag = 'scratch operand']
  #allocation3 [shape = 'f32[8,128]{1,0:T(8,128)}', space=vmem, size = 0x1000, scoped, tag = 'scratch operand']
  %s0 = inlined_call_operand.hbm [shape: bf16[8,8,128], index: 0, kind: input, shape index: {}]
  %s1 = inlined_call_operand.hbm [shape: bf16[128,512], index: 1, kind: input, shape index: {}]
  %s2 = inlined_call_operand.hbm [shape: bf16[128,512], index: 2, kind: input, shape index: {}]
  %s3 = inlined_call_operand.vmem [shape: f32[1,512], index: 3, kind: input, shape index: {}]
  %s4 = inlined_call_operand.hbm [shape: bf16[8,8,128], index: 4, kind: output, shape index: {}]
  %s5 = sld [smem:[#allocation0]]
  $region65: #{tpu_custom_call.1} parent=0
    _
  %s7 = ssub.s32 1, %s5
  %s8 = scalar_select 0, %s7, %s5
  $region1: #{tpu_custom_call.1} parent=0
    #allocation4 [shape = 'u8[16384]{0}', space=vmem, size = 0x4000, scoped, tag = 'input window, operand 0']
    #allocation5 [shape = 's32[2]{0}', space=sflag, size = 0x8, scoped, tag = 'scoped memory for tpu_custom_call.1']
    #allocation6 [shape = 's32[2]{0}', space=sflag, size = 0x8, scoped, tag = 'scoped memory for tpu_custom_call.1']
    #allocation7 [shape = 'u8[131072]{0}', space=vmem, size = 0x20000, scoped, tag = 'input window, operand 1, single buffered']
    #allocation8 [shape = 's32[1]{0}', space=sflag, size = 0x4, scoped, tag = 'scoped memory for tpu_custom_call.1']
    #allocation9 [shape = 'u8[131072]{0}', space=vmem, size = 0x20000, scoped, tag = 'input window, operand 2, single buffered']
    #allocation10 [shape = 'u8[16384]{0}', space=vmem, size = 0x4000, scoped, tag = 'output window, operand 0']
    %9 = vsyncpa [#allocation5], 0
    %s10 = scalar_lea.sflag [#allocation5], 1
    %11 = vsyncpa %s10, 0
    %12 = vsyncpa [#allocation8], 0
    %13 = vsyncpa [#allocation6], 0
    %s14 = scalar_lea.sflag [#allocation6], 1
    %15 = vsyncpa %s14, 0
    loop: start=0, step=1, limit=4
    $region2: #{tpu_custom_call.1} parent=1 // loop_pre_header
      _
    $region3: #{tpu_custom_call.1} parent=1 // loop_header
      %s17 = sphi 0, %s21
      %p18 = scmp.ge.s32.totalorder %s17, 4
      %s24 = sphi 0, %s36
      %s25 = sphi 0, %s32
      %s26 = sphi 0, %s24
      %s27 = sphi 0, %s25
      %s28 = sphi 0, %s26
      %s29 = sphi 0, %s27
      %s41 = sphi 0, %s43
      %s44 = sphi 0, %s41
      %s45 = sphi 0, %s44
      %s61 = sphi 0, %s45
      %s65 = sphi 0, %s65
      %s67 = sphi 0, %s65
      %s68 = sphi 0, %s67
      %s82 = sphi 0, %s68
      %s86 = sphi 0, %s86
      %s88 = sphi 0, %s86
      %s89 = sphi 0, %s88
      %s103 = sphi 0, %s89
      %s107 = sphi 0, %s107
      %s109 = sphi 0, %s107
      %s110 = sphi 0, %s109
      %s124 = sphi 0, %s110
      %s132 = sphi 0, %s134
      %s135 = sphi 0, %s132
      %s136 = sphi 0, %s135
      %s152 = sphi 0, %s136
    $region4: #{tpu_custom_call.1} parent=1 // loop_header_branch
      %20 = sbr.rel (%p18) target = $region8
    $region5: #{tpu_custom_call.1} parent=1 // loop_body
      %s22 = ssub.s32 %s17, 1
      %s23 = ssub.s32 %s17, 2
      %s30 = sadd.s32 1, %s25
      %p31 = scmp.ge.s32.totalorder %s30, 2
      %s32 = scalar_select %p31, 0, %s30
      %s33 = sadd.s32 1, %s24
      %s34 = scalar_select %p31, %s33, %s24
      %p35 = scmp.ge.s32.totalorder %s34, 1
      %s36 = scalar_select %p35, 0, %s34
      %s37 = ssub.s32 %s25, %s32
      %s38 = ssub.s32 %s24, %s36
      %s39 = sor.u32 %s37, %s38
      %p40 = scmp.eq.s32.totalorder %s39, 0
      %s42 = sadd.s32 %s41, 1
      %s43 = scalar_select %p40, %s41, %s42
      %p46 = pneg %p40
      %p47 = scmp.eq.s32.totalorder %s17, 1
      %p48 = por %p46, %p47
      %p49 = scmp.ne.s32.totalorder %s41, %s44
      %p50 = scmp.eq.s32.totalorder %s17, 0
      %p51 = por %p49, %p50
      %p52 = scmp.ne.s32.totalorder %s41, %s44
      %p53 = scmp.eq.s32.totalorder %s22, 1
      %p54 = por %p52, %p53
      %p55 = scmp.ne.s32.totalorder %s44, %s45
      %p56 = scmp.eq.s32.totalorder %s22, 0
      %p57 = por %p55, %p56
      %p58 = scmp.ne.s32.totalorder %s44, %s45
      %p59 = scmp.eq.s32.totalorder %s23, 1
      %p60 = por %p58, %p59
      %p62 = scmp.ne.s32.totalorder %s45, %s61
      %p63 = scmp.eq.s32.totalorder %s23, 0
      %p64 = por %p62, %p63
      %s66 = sadd.s32 %s65, 1
      %p69 = scmp.eq.s32.totalorder %s17, 1
      %p70 = scmp.ne.s32.totalorder %s65, %s67
      %p71 = scmp.eq.s32.totalorder %s17, 0
      %p72 = por %p70, %p71
      %p73 = scmp.ne.s32.totalorder %s65, %s67
      %p74 = scmp.eq.s32.totalorder %s22, 1
      %p75 = por %p73, %p74
      %p76 = scmp.ne.s32.totalorder %s67, %s68
      %p77 = scmp.eq.s32.totalorder %s22, 0
      %p78 = por %p76, %p77
      %p79 = scmp.ne.s32.totalorder %s67, %s68
      %p80 = scmp.eq.s32.totalorder %s23, 1
      %p81 = por %p79, %p80
      %p83 = scmp.ne.s32.totalorder %s68, %s82
      %p84 = scmp.eq.s32.totalorder %s23, 0
      %p85 = por %p83, %p84
      %s87 = sadd.s32 %s86, 1
      %p90 = scmp.eq.s32.totalorder %s17, 1
      %p91 = scmp.ne.s32.totalorder %s86, %s88
      %p92 = scmp.eq.s32.totalorder %s17, 0
      %p93 = por %p91, %p92
      %p94 = scmp.ne.s32.totalorder %s86, %s88
      %p95 = scmp.eq.s32.totalorder %s22, 1
      %p96 = por %p94, %p95
      %p97 = scmp.ne.s32.totalorder %s88, %s89
      %p98 = scmp.eq.s32.totalorder %s22, 0
      %p99 = por %p97, %p98
      %p100 = scmp.ne.s32.totalorder %s88, %s89
      %p101 = scmp.eq.s32.totalorder %s23, 1
      %p102 = por %p100, %p101
      %p104 = scmp.ne.s32.totalorder %s89, %s103
      %p105 = scmp.eq.s32.totalorder %s23, 0
      %p106 = por %p104, %p105
      %s108 = sadd.s32 %s107, 1
      %p111 = scmp.eq.s32.totalorder %s17, 1
      %p112 = scmp.ne.s32.totalorder %s107, %s109
      %p113 = scmp.eq.s32.totalorder %s17, 0
      %p114 = por %p112, %p113
      %p115 = scmp.ne.s32.totalorder %s107, %s109
      %p116 = scmp.eq.s32.totalorder %s22, 1
      %p117 = por %p115, %p116
      %p118 = scmp.ne.s32.totalorder %s109, %s110
      %p119 = scmp.eq.s32.totalorder %s22, 0
      %p120 = por %p118, %p119
      %p121 = scmp.ne.s32.totalorder %s109, %s110
      %p122 = scmp.eq.s32.totalorder %s23, 1
      %p123 = por %p121, %p122
      %p125 = scmp.ne.s32.totalorder %s110, %s124
      %p126 = scmp.eq.s32.totalorder %s23, 0
      %p127 = por %p125, %p126
      %s128 = ssub.s32 %s25, %s32
      %s129 = ssub.s32 %s24, %s36
      %s130 = sor.u32 %s128, %s129
      %p131 = scmp.eq.s32.totalorder %s130, 0
      %s133 = sadd.s32 %s132, 1
      %s134 = scalar_select %p131, %s132, %s133
      %p137 = pneg %p131
      %p138 = scmp.eq.s32.totalorder %s17, 1
      %p139 = por %p137, %p138
      %p140 = scmp.ne.s32.totalorder %s132, %s135
      %p141 = scmp.eq.s32.totalorder %s17, 0
      %p142 = por %p140, %p141
      %p143 = scmp.ne.s32.totalorder %s132, %s135
      %p144 = scmp.eq.s32.totalorder %s22, 1
      %p145 = por %p143, %p144
      %p146 = scmp.ne.s32.totalorder %s135, %s136
      %p147 = scmp.eq.s32.totalorder %s22, 0
      %p148 = por %p146, %p147
      %p149 = scmp.ne.s32.totalorder %s135, %s136
      %p150 = scmp.eq.s32.totalorder %s23, 1
      %p151 = por %p149, %p150
      %p153 = scmp.ne.s32.totalorder %s136, %s152
      %p154 = scmp.eq.s32.totalorder %s23, 0
      %p155 = por %p153, %p154
      %p156 = scmp.le.s32.totalorder 1, %s17
      %p157 = scmp.lt.s32.totalorder %s17, 3
      %p158 = pnand %p156, %p157
      %p159 = pneg %p158
      // Predicated region
      $region9: #{tpu_custom_call.1} parent=5 // pred_check
        _
      $region10: #{tpu_custom_call.1} parent=5 // pred_check_branch
        %161 = sbr.rel (%p158) target = $region12
      $region11: #{tpu_custom_call.1} parent=5 // pred_region
        %s162 = ssub.s32 %s17, 1
        // Predicated region
        $region13: #{tpu_custom_call.1} parent=11 // pred_check
          %p163 = pneg %p78
        $region14: #{tpu_custom_call.1} parent=11 // pred_check_branch
          %165 = sbr.rel (%p163) target = $region16
        $region15: #{tpu_custom_call.1} parent=11 // pred_region
          %s167 = ssub.s32 4096, 4096
          %168 = vsyncadd [#allocation8], %s167
          %s169 = sshll.u32 [#allocation7], 4
          %s170 = int_to_ptr.vmem [resolvable:$true] %s169
          %175 = dma.hbm_to_vmem [thread:$0]  %s1, 4096, %s170, [#allocation8], 256, 256, 16
        $region16: #{tpu_custom_call.1} parent=11 // pred_fallthru
          _
        // Predicated region
        $region17: #{tpu_custom_call.1} parent=11 // pred_check
          %p176 = pneg %p99
        $region18: #{tpu_custom_call.1} parent=11 // pred_check_branch
          %178 = sbr.rel (%p176) target = $region20
        $region19: #{tpu_custom_call.1} parent=11 // pred_region
          %s180 = ssub.s32 4096, 4096
          %181 = vsyncadd [#allocation8], %s180
          %s182 = sshll.u32 [#allocation9], 4
          %s183 = int_to_ptr.vmem [resolvable:$true] %s182
          %188 = dma.hbm_to_vmem [thread:$0]  %s2, 4096, %s183, [#allocation8], 256, 256, 16
        $region20: #{tpu_custom_call.1} parent=11 // pred_fallthru
          _
        // Predicated region
        $region21: #{tpu_custom_call.1} parent=11 // pred_check
          %p189 = pneg %p120
        $region22: #{tpu_custom_call.1} parent=11 // pred_check_branch
          %191 = sbr.rel (%p189) target = $region24
        $region23: #{tpu_custom_call.1} parent=11 // pred_region
          _
        $region24: #{tpu_custom_call.1} parent=11 // pred_fallthru
          _
      $region12: #{tpu_custom_call.1} parent=5 // pred_fallthru
        _
      %p192 = scmp.lt.s32.totalorder %s17, 2
      // Predicated region
      $region25: #{tpu_custom_call.1} parent=5 // pred_check
        %p193 = pneg %p192
      $region26: #{tpu_custom_call.1} parent=5 // pred_check_branch
        %195 = sbr.rel (%p193) target = $region28
      $region27: #{tpu_custom_call.1} parent=5 // pred_region
        // Predicated region
        $region29: #{tpu_custom_call.1} parent=27 // pred_check
          %p196 = pneg %p51
        $region30: #{tpu_custom_call.1} parent=27 // pred_check_branch
          %198 = sbr.rel (%p196) target = $region32
        $region31: #{tpu_custom_call.1} parent=27 // pred_region
          %s199 = sand.u32 %s41, 1
          %s200 = scalar_lea.sflag [#allocation5], %s199
          %s201 = sand.u32 %s41, 1
          %s202 = smul.addr %s201, 16
          %s203 = scalar_lea.vmem [#allocation4], %s202
          %s204 = smul.u32 4, %s25
          %s206 = ssub.s32 256, 256
          %207 = vsyncadd %s200, %s206
          %s208 = sadd.s32 %s24, %s204
          %s209 = smul.addr %s208, 64
          %s210 = scalar_lea.hbm %s0, %s209
          %s211 = sshll.u32 %s203, 4
          %s212 = int_to_ptr.vmem [resolvable:$true] %s211
          %217 = dma.hbm_to_vmem [thread:$0]  %s210, 256, %s212, %s200, 64, 64, 4
        $region32: #{tpu_custom_call.1} parent=27 // pred_fallthru
          _
      $region28: #{tpu_custom_call.1} parent=5 // pred_fallthru
        _
      %p218 = scmp.le.s32.totalorder 1, %s17
      %p219 = scmp.lt.s32.totalorder %s17, 3
      %p220 = pnand %p218, %p219
      %p221 = pneg %p220
      // Predicated region
      $region33: #{tpu_custom_call.1} parent=5 // pred_check
        _
      $region34: #{tpu_custom_call.1} parent=5 // pred_check_branch
        %223 = sbr.rel (%p220) target = $region36
      $region35: #{tpu_custom_call.1} parent=5 // pred_region
        %s224 = ssub.s32 %s17, 1
        %s225 = sand.u32 %s44, 1
        %s226 = scalar_lea.sflag [#allocation5], %s225
        %s227 = sand.u32 %s44, 1
        %s228 = smul.addr %s227, 16
        %s229 = scalar_lea.vmem [#allocation4], %s228
        // Predicated region
        $region37: #{tpu_custom_call.1} parent=35 // pred_check
          %p230 = pneg %p57
        $region38: #{tpu_custom_call.1} parent=35 // pred_check_branch
          %232 = sbr.rel (%p230) target = $region40
        $region39: #{tpu_custom_call.1} parent=35 // pred_region
          %233 = dma.done %s226, 256
        $region40: #{tpu_custom_call.1} parent=35 // pred_fallthru
          _
        // Predicated region
        $region41: #{tpu_custom_call.1} parent=35 // pred_check
          %p234 = pneg %p78
        $region42: #{tpu_custom_call.1} parent=35 // pred_check_branch
          %236 = sbr.rel (%p234) target = $region44
        $region43: #{tpu_custom_call.1} parent=35 // pred_region
          %237 = dma.done [#allocation8], 4096
        $region44: #{tpu_custom_call.1} parent=35 // pred_fallthru
          _
        // Predicated region
        $region45: #{tpu_custom_call.1} parent=35 // pred_check
          %p238 = pneg %p99
        $region46: #{tpu_custom_call.1} parent=35 // pred_check_branch
          %240 = sbr.rel (%p238) target = $region48
        $region47: #{tpu_custom_call.1} parent=35 // pred_region
          %241 = dma.done [#allocation8], 4096
        $region48: #{tpu_custom_call.1} parent=35 // pred_fallthru
          _
        %s242 = sand.u32 %s44, 1
        %s243 = scalar_lea.sflag [#allocation5], %s242
        %s244 = sand.u32 %s44, 1
        %s245 = smul.addr %s244, 16
        %s246 = scalar_lea.vmem [#allocation4], %s245
        %p247 = pneg %p57
        %p248 = pneg %p54
        %p249 = pneg %p78
        %p250 = pneg %p75
        %p251 = pneg %p99
        %p252 = pneg %p96
        %p253 = pneg %p120
        %p254 = pneg %p117
        %p255 = pneg %p148
        %p256 = pneg %p145
        %s257 = sand.u32 %s135, 1
        %s258 = scalar_lea.sflag [#allocation6], %s257
        %s259 = sand.u32 %s135, 1
        %s260 = smul.addr %s259, 16
        %s261 = scalar_lea.vmem [#allocation10], %s260
        %s262 = smul.u32 4, %s27
        %s263 = smul.u32 4, %s27
        %p265 = scmp.eq.s32.totalorder %s27, 0
        // Predicated region
        $region49: #{tpu_custom_call.1} parent=35 // pred_check
          %p266 = pneg %p265
        $region50: #{tpu_custom_call.1} parent=35 // pred_check_branch
          %268 = sbr.rel (%p266) target = $region52
        $region51: #{tpu_custom_call.1} parent=35 // pred_region
          %269 = vst [vmem:[#allocation2] sm:$0xff] 0.0
          %270 = vst [vmem:[#allocation3] sm:$0xff] 0.0
        $region52: #{tpu_custom_call.1} parent=35 // pred_fallthru
          _
        %v271 = vld [vmem:[#allocation7] sm:$0xff]
        %v272 = vld [vmem:[#allocation7 + $0x8] sm:$0xff]
        %v273 = vld [vmem:[#allocation7 + $0x10] sm:$0xff]
        %v274 = vld [vmem:[#allocation7 + $0x18] sm:$0xff]
        %v275 = vld [vmem:[#allocation7 + $0x20] sm:$0xff]
        %v276 = vld [vmem:[#allocation7 + $0x28] sm:$0xff]
        %v277 = vld [vmem:[#allocation7 + $0x30] sm:$0xff]
        %v278 = vld [vmem:[#allocation7 + $0x38] sm:$0xff]
        %v279 = vld [vmem:[#allocation7 + $0x40] sm:$0xff]
        %v280 = vld [vmem:[#allocation7 + $0x48] sm:$0xff]
        %v281 = vld [vmem:[#allocation7 + $0x50] sm:$0xff]
        %v282 = vld [vmem:[#allocation7 + $0x58] sm:$0xff]
        %v283 = vld [vmem:[#allocation7 + $0x60] sm:$0xff]
        %v284 = vld [vmem:[#allocation7 + $0x68] sm:$0xff]
        %v285 = vld [vmem:[#allocation7 + $0x70] sm:$0xff]
        %v286 = vld [vmem:[#allocation7 + $0x78] sm:$0xff]
        %v287 = vld [vmem:[#allocation7 + $0x80] sm:$0xff]
        %v288 = vld [vmem:[#allocation7 + $0x88] sm:$0xff]
        %v289 = vld [vmem:[#allocation7 + $0x90] sm:$0xff]
        %v290 = vld [vmem:[#allocation7 + $0x98] sm:$0xff]
        %v291 = vld [vmem:[#allocation7 + $0xa0] sm:$0xff]
        %v292 = vld [vmem:[#allocation7 + $0xa8] sm:$0xff]
        %v293 = vld [vmem:[#allocation7 + $0xb0] sm:$0xff]
        %v294 = vld [vmem:[#allocation7 + $0xb8] sm:$0xff]
        %v295 = vld [vmem:[#allocation7 + $0xc0] sm:$0xff]
        %v296 = vld [vmem:[#allocation7 + $0xc8] sm:$0xff]
        %v297 = vld [vmem:[#allocation7 + $0xd0] sm:$0xff]
        %v298 = vld [vmem:[#allocation7 + $0xd8] sm:$0xff]
        %v299 = vld [vmem:[#allocation7 + $0xe0] sm:$0xff]
        %v300 = vld [vmem:[#allocation7 + $0xe8] sm:$0xff]
        %v301 = vld [vmem:[#allocation7 + $0xf0] sm:$0xff]
        %v302 = vld [vmem:[#allocation7 + $0xf8] sm:$0xff]
        %v303 = vld [vmem:[#allocation9] sm:$0xff]
        %v304 = vld [vmem:[#allocation9 + $0x8] sm:$0xff]
        %v305 = vld [vmem:[#allocation9 + $0x10] sm:$0xff]
        %v306 = vld [vmem:[#allocation9 + $0x18] sm:$0xff]
        %v307 = vld [vmem:[#allocation9 + $0x20] sm:$0xff]
        %v308 = vld [vmem:[#allocation9 + $0x28] sm:$0xff]
        %v309 = vld [vmem:[#allocation9 + $0x30] sm:$0xff]
        %v310 = vld [vmem:[#allocation9 + $0x38] sm:$0xff]
        %v311 = vld [vmem:[#allocation9 + $0x40] sm:$0xff]
        %v312 = vld [vmem:[#allocation9 + $0x48] sm:$0xff]
        %v313 = vld [vmem:[#allocation9 + $0x50] sm:$0xff]
        %v314 = vld [vmem:[#allocation9 + $0x58] sm:$0xff]
        %v315 = vld [vmem:[#allocation9 + $0x60] sm:$0xff]
        %v316 = vld [vmem:[#allocation9 + $0x68] sm:$0xff]
        %v317 = vld [vmem:[#allocation9 + $0x70] sm:$0xff]
        %v318 = vld [vmem:[#allocation9 + $0x78] sm:$0xff]
        %v319 = vld [vmem:[#allocation9 + $0x80] sm:$0xff]
        %v320 = vld [vmem:[#allocation9 + $0x88] sm:$0xff]
        %v321 = vld [vmem:[#allocation9 + $0x90] sm:$0xff]
        %v322 = vld [vmem:[#allocation9 + $0x98] sm:$0xff]
        %v323 = vld [vmem:[#allocation9 + $0xa0] sm:$0xff]
        %v324 = vld [vmem:[#allocation9 + $0xa8] sm:$0xff]
        %v325 = vld [vmem:[#allocation9 + $0xb0] sm:$0xff]
        %v326 = vld [vmem:[#allocation9 + $0xb8] sm:$0xff]
        %v327 = vld [vmem:[#allocation9 + $0xc0] sm:$0xff]
        %v328 = vld [vmem:[#allocation9 + $0xc8] sm:$0xff]
        %v329 = vld [vmem:[#allocation9 + $0xd0] sm:$0xff]
        %v330 = vld [vmem:[#allocation9 + $0xd8] sm:$0xff]
        %v331 = vld [vmem:[#allocation9 + $0xe0] sm:$0xff]
        %v332 = vld [vmem:[#allocation9 + $0xe8] sm:$0xff]
        %v333 = vld [vmem:[#allocation9 + $0xf0] sm:$0xff]
        %v334 = vld [vmem:[#allocation9 + $0xf8] sm:$0xff]
        %v335 = vld [vmem:[%s3] sm:$0xf]
        %v336 = vld [vmem:[#allocation2] sm:$0xff]
        %v337 = vld [vmem:[#allocation3] sm:$0xff]
        %v338 = vld [vmem:[%s229] sm:$0xf]
        %v339 = vpack.c.bf16 %v336, %v336
        %v372 = vunpack.c.l.b16 %v303
        %v373 = vunpack.c.h.b16 %v303
        %v374 = vunpack.c.l.b16 %v304
        %v375 = vunpack.c.h.b16 %v304
        %v376 = vunpack.c.l.b16 %v305
        %v377 = vunpack.c.h.b16 %v305
        %v378 = vunpack.c.l.b16 %v306
        %v379 = vunpack.c.h.b16 %v306
        %v380 = vunpack.c.l.b16 %v307
        %v381 = vunpack.c.h.b16 %v307
        %v382 = vunpack.c.l.b16 %v308
        %v383 = vunpack.c.h.b16 %v308
        %v384 = vunpack.c.l.b16 %v309
        %v385 = vunpack.c.h.b16 %v309
        %v386 = vunpack.c.l.b16 %v310
        %v387 = vunpack.c.h.b16 %v310
        %v388 = vunpack.c.l.b16 %v311
        %v389 = vunpack.c.h.b16 %v311
        %v390 = vunpack.c.l.b16 %v312
        %v391 = vunpack.c.h.b16 %v312
        %v392 = vunpack.c.l.b16 %v313
        %v393 = vunpack.c.h.b16 %v313
        %v394 = vunpack.c.l.b16 %v314
        %v395 = vunpack.c.h.b16 %v314
        %v396 = vunpack.c.l.b16 %v315
        %v397 = vunpack.c.h.b16 %v315
        %v398 = vunpack.c.l.b16 %v316
        %v399 = vunpack.c.h.b16 %v316
        %v400 = vunpack.c.l.b16 %v317
        %v401 = vunpack.c.h.b16 %v317
        %v402 = vunpack.c.l.b16 %v318
        %v403 = vunpack.c.h.b16 %v318
        %v404 = vunpack.c.l.b16 %v319
        %v405 = vunpack.c.h.b16 %v319
        %v406 = vunpack.c.l.b16 %v320
        %v407 = vunpack.c.h.b16 %v320
        %v408 = vunpack.c.l.b16 %v321
        %v409 = vunpack.c.h.b16 %v321
        %v410 = vunpack.c.l.b16 %v322
        %v411 = vunpack.c.h.b16 %v322
        %v412 = vunpack.c.l.b16 %v323
        %v413 = vunpack.c.h.b16 %v323
        %v414 = vunpack.c.l.b16 %v324
        %v415 = vunpack.c.h.b16 %v324
        %v416 = vunpack.c.l.b16 %v325
        %v417 = vunpack.c.h.b16 %v325
        %v418 = vunpack.c.l.b16 %v326
        %v419 = vunpack.c.h.b16 %v326
        %v420 = vunpack.c.l.b16 %v327
        %v421 = vunpack.c.h.b16 %v327
        %v422 = vunpack.c.l.b16 %v328
        %v423 = vunpack.c.h.b16 %v328
        %v424 = vunpack.c.l.b16 %v329
        %v425 = vunpack.c.h.b16 %v329
        %v426 = vunpack.c.l.b16 %v330
        %v427 = vunpack.c.h.b16 %v330
        %v428 = vunpack.c.l.b16 %v331
        %v429 = vunpack.c.h.b16 %v331
        %v430 = vunpack.c.l.b16 %v332
        %v431 = vunpack.c.h.b16 %v332
        %v432 = vunpack.c.l.b16 %v333
        %v433 = vunpack.c.h.b16 %v333
        %v434 = vunpack.c.l.b16 %v334
        %v435 = vunpack.c.h.b16 %v334
        %v436 = vpack.c.b16 %v376, %v372
        %v437 = vpack.c.b16 %v377, %v373
        %v438 = vpack.c.b16 %v378, %v374
        %v439 = vpack.c.b16 %v379, %v375
        %v440 = vpack.c.b16 %v384, %v380
        %v441 = vpack.c.b16 %v385, %v381
        %v442 = vpack.c.b16 %v386, %v382
        %v443 = vpack.c.b16 %v387, %v383
        %v444 = vpack.c.b16 %v392, %v388
        %v445 = vpack.c.b16 %v393, %v389
        %v446 = vpack.c.b16 %v394, %v390
        %v447 = vpack.c.b16 %v395, %v391
        %v448 = vpack.c.b16 %v400, %v396
        %v449 = vpack.c.b16 %v401, %v397
        %v450 = vpack.c.b16 %v402, %v398
        %v451 = vpack.c.b16 %v403, %v399
        %v452 = vpack.c.b16 %v408, %v404
        %v453 = vpack.c.b16 %v409, %v405
        %v454 = vpack.c.b16 %v410, %v406
        %v455 = vpack.c.b16 %v411, %v407
        %v456 = vpack.c.b16 %v416, %v412
        %v457 = vpack.c.b16 %v417, %v413
        %v458 = vpack.c.b16 %v418, %v414
        %v459 = vpack.c.b16 %v419, %v415
        %v460 = vpack.c.b16 %v424, %v420
        %v461 = vpack.c.b16 %v425, %v421
        %v462 = vpack.c.b16 %v426, %v422
        %v463 = vpack.c.b16 %v427, %v423
        %v464 = vpack.c.b16 %v432, %v428
        %v465 = vpack.c.b16 %v433, %v429
        %v466 = vpack.c.b16 %v434, %v430
        %v467 = vpack.c.b16 %v435, %v431
        %500 = vmatprep.subr.bf16.mxu0 %v465
        %501 = vmatpush1.bf16.msra.mxu0 %v464
        %502 = vmatprep.subr.bf16.mxu0 %v461
        %503 = vmatpush1.bf16.msra.mxu0 %v460
        %504 = vmatprep.subr.bf16.mxu0 %v457
        %505 = vmatpush1.bf16.msra.mxu0 %v456
        %506 = vmatprep.subr.bf16.mxu0 %v453
        %507 = vmatpush1.bf16.msra.mxu0 %v452
        %508 = vmatprep.subr.bf16.mxu0 %v449
        %509 = vmatpush1.bf16.msra.mxu0 %v448
        %510 = vmatprep.subr.bf16.mxu0 %v445
        %511 = vmatpush1.bf16.msra.mxu0 %v444
        %512 = vmatprep.subr.bf16.mxu0 %v441
        %513 = vmatpush1.bf16.msra.mxu0 %v440
        %514 = vmatprep.subr.bf16.mxu0 %v437
        %515 = vmatpush1.bf16.msra.mxu0 %v436
        %516 = vmatprep.subr.bf16.mxu0 0
        %517 = vmatpush2.bf16.msra.mxu0 0
        %518 = vmatprep.subr.bf16.mxu0 0
        %519 = vmatpush2.bf16.msra.mxu0 0
        %520 = vmatprep.subr.bf16.mxu0 0
        %521 = vmatpush2.bf16.msra.mxu0 0
        %522 = vmatprep.subr.bf16.mxu0 0
        %523 = vmatpush2.bf16.msra.mxu0 0
        %524 = vmatprep.subr.bf16.mxu0 0
        %525 = vmatpush2.bf16.msra.mxu0 0
        %526 = vmatprep.subr.bf16.mxu0 0
        %527 = vmatpush2.bf16.msra.mxu0 0
        %528 = vmatprep.subr.bf16.mxu0 0
        %529 = vmatpush2.bf16.msra.mxu0 0
        %530 = vmatprep.subr.bf16.mxu0 0
        %531 = vmatpush2.bf16.msra.mxu0 0
        %532 = vmatprep.mubr.bf16.mxu0 0
        %533 = vmatmul.mubr.bf16.gmra.mxu0 %v339
        %v534 = vpop.f32.mrf.mxu0
        %v535 = vadd.f32 0.0, %v534
        %v536 = vpop.f32.mrf.mxu0
        %v537 = vadd.f32 0.0, %v536
        %v538 = vpop.f32.mrf.mxu0
        %v539 = vpop.f32.mrf.mxu0
        %540 = vdwg.mxu0
        %541 = vmatprep.subr.bf16.mxu0 %v467
        %542 = vmatpush1.bf16.msra.mxu0 %v466
        %543 = vmatprep.subr.bf16.mxu0 %v463
        %544 = vmatpush1.bf16.msra.mxu0 %v462
        %545 = vmatprep.subr.bf16.mxu0 %v459
        %546 = vmatpush1.bf16.msra.mxu0 %v458
        %547 = vmatprep.subr.bf16.mxu0 %v455
        %548 = vmatpush1.bf16.msra.mxu0 %v454
        %549 = vmatprep.subr.bf16.mxu0 %v451
        %550 = vmatpush1.bf16.msra.mxu0 %v450
        %551 = vmatprep.subr.bf16.mxu0 %v447
        %552 = vmatpush1.bf16.msra.mxu0 %v446
        %553 = vmatprep.subr.bf16.mxu0 %v443
        %554 = vmatpush1.bf16.msra.mxu0 %v442
        %555 = vmatprep.subr.bf16.mxu0 %v439
        %556 = vmatpush1.bf16.msra.mxu0 %v438
        %557 = vmatprep.subr.bf16.mxu0 0
        %558 = vmatpush2.bf16.msra.mxu0 0
        %559 = vmatprep.subr.bf16.mxu0 0
        %560 = vmatpush2.bf16.msra.mxu0 0
        %561 = vmatprep.subr.bf16.mxu0 0
        %562 = vmatpush2.bf16.msra.mxu0 0
        %563 = vmatprep.subr.bf16.mxu0 0
        %564 = vmatpush2.bf16.msra.mxu0 0
        %565 = vmatprep.subr.bf16.mxu0 0
        %566 = vmatpush2.bf16.msra.mxu0 0
        %567 = vmatprep.subr.bf16.mxu0 0
        %568 = vmatpush2.bf16.msra.mxu0 0
        %569 = vmatprep.subr.bf16.mxu0 0
        %570 = vmatpush2.bf16.msra.mxu0 0
        %571 = vmatprep.subr.bf16.mxu0 0
        %572 = vmatpush2.bf16.msra.mxu0 0
        %573 = vmatprep.mubr.bf16.mxu0 0
        %574 = vmatmul.mubr.bf16.gmra.mxu0 %v339
        %v575 = vpop.f32.mrf.mxu0
        %v576 = vadd.f32 0.0, %v575
        %v577 = vpop.f32.mrf.mxu0
        %v578 = vadd.f32 0.0, %v577
        %v579 = vpop.f32.mrf.mxu0
        %v580 = vpop.f32.mrf.mxu0
        %581 = vdwg.mxu0
        %v614 = vunpack.c.l.b16 %v271
        %v615 = vunpack.c.h.b16 %v271
        %v616 = vunpack.c.l.b16 %v272
        %v617 = vunpack.c.h.b16 %v272
        %v618 = vunpack.c.l.b16 %v273
        %v619 = vunpack.c.h.b16 %v273
        %v620 = vunpack.c.l.b16 %v274
        %v621 = vunpack.c.h.b16 %v274
        %v622 = vunpack.c.l.b16 %v275
        %v623 = vunpack.c.h.b16 %v275
        %v624 = vunpack.c.l.b16 %v276
        %v625 = vunpack.c.h.b16 %v276
        %v626 = vunpack.c.l.b16 %v277
        %v627 = vunpack.c.h.b16 %v277
        %v628 = vunpack.c.l.b16 %v278
        %v629 = vunpack.c.h.b16 %v278
        %v630 = vunpack.c.l.b16 %v279
        %v631 = vunpack.c.h.b16 %v279
        %v632 = vunpack.c.l.b16 %v280
        %v633 = vunpack.c.h.b16 %v280
        %v634 = vunpack.c.l.b16 %v281
        %v635 = vunpack.c.h.b16 %v281
        %v636 = vunpack.c.l.b16 %v282
        %v637 = vunpack.c.h.b16 %v282
        %v638 = vunpack.c.l.b16 %v283
        %v639 = vunpack.c.h.b16 %v283
        %v640 = vunpack.c.l.b16 %v284
        %v641 = vunpack.c.h.b16 %v284
        %v642 = vunpack.c.l.b16 %v285
        %v643 = vunpack.c.h.b16 %v285
        %v644 = vunpack.c.l.b16 %v286
        %v645 = vunpack.c.h.b16 %v286
        %v646 = vunpack.c.l.b16 %v287
        %v647 = vunpack.c.h.b16 %v287
        %v648 = vunpack.c.l.b16 %v288
        %v649 = vunpack.c.h.b16 %v288
        %v650 = vunpack.c.l.b16 %v289
        %v651 = vunpack.c.h.b16 %v289
        %v652 = vunpack.c.l.b16 %v290
        %v653 = vunpack.c.h.b16 %v290
        %v654 = vunpack.c.l.b16 %v291
        %v655 = vunpack.c.h.b16 %v291
        %v656 = vunpack.c.l.b16 %v292
        %v657 = vunpack.c.h.b16 %v292
        %v658 = vunpack.c.l.b16 %v293
        %v659 = vunpack.c.h.b16 %v293
        %v660 = vunpack.c.l.b16 %v294
        %v661 = vunpack.c.h.b16 %v294
        %v662 = vunpack.c.l.b16 %v295
        %v663 = vunpack.c.h.b16 %v295
        %v664 = vunpack.c.l.b16 %v296
        %v665 = vunpack.c.h.b16 %v296
        %v666 = vunpack.c.l.b16 %v297
        %v667 = vunpack.c.h.b16 %v297
        %v668 = vunpack.c.l.b16 %v298
        %v669 = vunpack.c.h.b16 %v298
        %v670 = vunpack.c.l.b16 %v299
        %v671 = vunpack.c.h.b16 %v299
        %v672 = vunpack.c.l.b16 %v300
        %v673 = vunpack.c.h.b16 %v300
        %v674 = vunpack.c.l.b16 %v301
        %v675 = vunpack.c.h.b16 %v301
        %v676 = vunpack.c.l.b16 %v302
        %v677 = vunpack.c.h.b16 %v302
        %v678 = vpack.c.b16 %v618, %v614
        %v679 = vpack.c.b16 %v619, %v615
        %v680 = vpack.c.b16 %v620, %v616
        %v681 = vpack.c.b16 %v621, %v617
        %v682 = vpack.c.b16 %v626, %v622
        %v683 = vpack.c.b16 %v627, %v623
        %v684 = vpack.c.b16 %v628, %v624
        %v685 = vpack.c.b16 %v629, %v625
        %v686 = vpack.c.b16 %v634, %v630
        %v687 = vpack.c.b16 %v635, %v631
        %v688 = vpack.c.b16 %v636, %v632
        %v689 = vpack.c.b16 %v637, %v633
        %v690 = vpack.c.b16 %v642, %v638
        %v691 = vpack.c.b16 %v643, %v639
        %v692 = vpack.c.b16 %v644, %v640
        %v693 = vpack.c.b16 %v645, %v641
        %v694 = vpack.c.b16 %v650, %v646
        %v695 = vpack.c.b16 %v651, %v647
        %v696 = vpack.c.b16 %v652, %v648
        %v697 = vpack.c.b16 %v653, %v649
        %v698 = vpack.c.b16 %v658, %v654
        %v699 = vpack.c.b16 %v659, %v655
        %v700 = vpack.c.b16 %v660, %v656
        %v701 = vpack.c.b16 %v661, %v657
        %v702 = vpack.c.b16 %v666, %v662
        %v703 = vpack.c.b16 %v667, %v663
        %v704 = vpack.c.b16 %v668, %v664
        %v705 = vpack.c.b16 %v669, %v665
        %v706 = vpack.c.b16 %v674, %v670
        %v707 = vpack.c.b16 %v675, %v671
        %v708 = vpack.c.b16 %v676, %v672
        %v709 = vpack.c.b16 %v677, %v673
        %742 = vmatprep.subr.bf16.mxu0 %v707
        %743 = vmatpush1.bf16.msra.mxu0 %v706
        %744 = vmatprep.subr.bf16.mxu0 %v703
        %745 = vmatpush1.bf16.msra.mxu0 %v702
        %746 = vmatprep.subr.bf16.mxu0 %v699
        %747 = vmatpush1.bf16.msra.mxu0 %v698
        %748 = vmatprep.subr.bf16.mxu0 %v695
        %749 = vmatpush1.bf16.msra.mxu0 %v694
        %750 = vmatprep.subr.bf16.mxu0 %v691
        %751 = vmatpush1.bf16.msra.mxu0 %v690
        %752 = vmatprep.subr.bf16.mxu0 %v687
        %753 = vmatpush1.bf16.msra.mxu0 %v686
        %754 = vmatprep.subr.bf16.mxu0 %v683
        %755 = vmatpush1.bf16.msra.mxu0 %v682
        %756 = vmatprep.subr.bf16.mxu0 %v679
        %757 = vmatpush1.bf16.msra.mxu0 %v678
        %758 = vmatprep.subr.bf16.mxu0 0
        %759 = vmatpush2.bf16.msra.mxu0 0
        %760 = vmatprep.subr.bf16.mxu0 0
        %761 = vmatpush2.bf16.msra.mxu0 0
        %762 = vmatprep.subr.bf16.mxu0 0
        %763 = vmatpush2.bf16.msra.mxu0 0
        %764 = vmatprep.subr.bf16.mxu0 0
        %765 = vmatpush2.bf16.msra.mxu0 0
        %766 = vmatprep.subr.bf16.mxu0 0
        %767 = vmatpush2.bf16.msra.mxu0 0
        %768 = vmatprep.subr.bf16.mxu0 0
        %769 = vmatpush2.bf16.msra.mxu0 0
        %770 = vmatprep.subr.bf16.mxu0 0
        %771 = vmatpush2.bf16.msra.mxu0 0
        %772 = vmatprep.subr.bf16.mxu0 0
        %773 = vmatpush2.bf16.msra.mxu0 0
        %774 = vmatprep.mubr.bf16.mxu0 0
        %775 = vmatmul.mubr.bf16.gmra.mxu0 %v338
        %v776 = vpop.f32.mrf.mxu0
        %v777 = vadd.f32 %v535, %v776
        %v778 = vpop.f32.mrf.mxu0
        %v779 = vadd.f32 %v537, %v778
        %v780 = vpop.f32.mrf.mxu0
        %v781 = vpop.f32.mrf.mxu0
        %782 = vdwg.mxu0
        %783 = vmatprep.subr.bf16.mxu0 %v709
        %784 = vmatpush1.bf16.msra.mxu0 %v708
        %785 = vmatprep.subr.bf16.mxu0 %v705
        %786 = vmatpush1.bf16.msra.mxu0 %v704
        %787 = vmatprep.subr.bf16.mxu0 %v701
        %788 = vmatpush1.bf16.msra.mxu0 %v700
        %789 = vmatprep.subr.bf16.mxu0 %v697
        %790 = vmatpush1.bf16.msra.mxu0 %v696
        %791 = vmatprep.subr.bf16.mxu0 %v693
        %792 = vmatpush1.bf16.msra.mxu0 %v692
        %793 = vmatprep.subr.bf16.mxu0 %v689
        %794 = vmatpush1.bf16.msra.mxu0 %v688
        %795 = vmatprep.subr.bf16.mxu0 %v685
        %796 = vmatpush1.bf16.msra.mxu0 %v684
        %797 = vmatprep.subr.bf16.mxu0 %v681
        %798 = vmatpush1.bf16.msra.mxu0 %v680
        %799 = vmatprep.subr.bf16.mxu0 0
        %800 = vmatpush2.bf16.msra.mxu0 0
        %801 = vmatprep.subr.bf16.mxu0 0
        %802 = vmatpush2.bf16.msra.mxu0 0
        %803 = vmatprep.subr.bf16.mxu0 0
        %804 = vmatpush2.bf16.msra.mxu0 0
        %805 = vmatprep.subr.bf16.mxu0 0
        %806 = vmatpush2.bf16.msra.mxu0 0
        %807 = vmatprep.subr.bf16.mxu0 0
        %808 = vmatpush2.bf16.msra.mxu0 0
        %809 = vmatprep.subr.bf16.mxu0 0
        %810 = vmatpush2.bf16.msra.mxu0 0
        %811 = vmatprep.subr.bf16.mxu0 0
        %812 = vmatpush2.bf16.msra.mxu0 0
        %813 = vmatprep.subr.bf16.mxu0 0
        %814 = vmatpush2.bf16.msra.mxu0 0
        %815 = vmatprep.mubr.bf16.mxu0 0
        %816 = vmatmul.mubr.bf16.gmra.mxu0 %v338
        %v817 = vpop.f32.mrf.mxu0
        %v818 = vadd.f32 %v576, %v817
        %v819 = vpop.f32.mrf.mxu0
        %v820 = vadd.f32 %v578, %v819
        %v821 = vpop.f32.mrf.mxu0
        %v822 = vpop.f32.mrf.mxu0
        %823 = vdwg.mxu0
        %v825 = vlaneseq
        %v826 = vshrl.u32 %v825, 7
        %v827 = vsub.s32 0, %v826
        %v828 = vrot.slane %v335, %v827
        %v829 = vlaneseq
        %v830 = vshrl.u32 %v829, 7
        %v831 = vsub.s32 1, %v830
        %v832 = vrot.slane %v335, %v831
        %v833 = vlaneseq
        %v834 = vshrl.u32 %v833, 7
        %v835 = vsub.s32 2, %v834
        %v836 = vrot.slane %v335, %v835
        %v837 = vlaneseq
        %v838 = vshrl.u32 %v837, 7
        %v839 = vsub.s32 3, %v838
        %v840 = vrot.slane %v335, %v839
        %v845 = vadd.f32 %v777, %v828
        %v846 = vadd.f32 %v779, %v832
        %v847 = vadd.f32 %v818, %v836
        %v848 = vadd.f32 %v820, %v840
        %v849 = vxor.u32 %v845, 2147483648
        %v850 = vmul.f32 %v849, 1.442695
        %v851 = vpow.pop %v850
        %v852 = vadd.f32 %v851, 1.0
        %v853 = vrcp.pop %v852
        %v854 = vmul.f32 1.0, %v853
        %v855 = vxor.u32 %v846, 2147483648
        %v856 = vmul.f32 %v855, 1.442695
        %v857 = vpow.pop %v856
        %v858 = vadd.f32 %v857, 1.0
        %v859 = vrcp.pop %v858
        %v860 = vmul.f32 1.0, %v859
        %v861 = vtanh.pop %v847
        %v862 = vxor.u32 %v848, 2147483648
        %v863 = vmul.f32 %v862, 1.442695
        %v864 = vpow.pop %v863
        %v865 = vadd.f32 %v864, 1.0
        %v866 = vrcp.pop %v865
        %v867 = vmul.f32 1.0, %v866
        %v868 = vmul.f32 %v860, %v337
        %v869 = vmul.f32 %v854, %v861
        %v870 = vadd.f32 %v868, %v869
        %v871 = vtanh.pop %v870
        %v872 = vmul.f32 %v867, %v871
        %v873 = vpack.c.bf16 %v872, %v872
        %874 = vst [vmem:[%s261] sm:$0xf] %v873
        %s875 = scalar_lea.vmem %s229, 4 [#allocation4]
        %v876 = vld [vmem:[%s875] sm:$0xf]
        %877 = vmatprep.subr.bf16.mxu0 %v465
        %878 = vmatpush1.bf16.msra.mxu0 %v464
        %879 = vmatprep.subr.bf16.mxu0 %v461
        %880 = vmatpush1.bf16.msra.mxu0 %v460
        %881 = vmatprep.subr.bf16.mxu0 %v457
        %882 = vmatpush1.bf16.msra.mxu0 %v456
        %883 = vmatprep.subr.bf16.mxu0 %v453
        %884 = vmatpush1.bf16.msra.mxu0 %v452
        %885 = vmatprep.subr.bf16.mxu0 %v449
        %886 = vmatpush1.bf16.msra.mxu0 %v448
        %887 = vmatprep.subr.bf16.mxu0 %v445
        %888 = vmatpush1.bf16.msra.mxu0 %v444
        %889 = vmatprep.subr.bf16.mxu0 %v441
        %890 = vmatpush1.bf16.msra.mxu0 %v440
        %891 = vmatprep.subr.bf16.mxu0 %v437
        %892 = vmatpush1.bf16.msra.mxu0 %v436
        %893 = vmatprep.subr.bf16.mxu0 0
        %894 = vmatpush2.bf16.msra.mxu0 0
        %895 = vmatprep.subr.bf16.mxu0 0
        %896 = vmatpush2.bf16.msra.mxu0 0
        %897 = vmatprep.subr.bf16.mxu0 0
        %898 = vmatpush2.bf16.msra.mxu0 0
        %899 = vmatprep.subr.bf16.mxu0 0
        %900 = vmatpush2.bf16.msra.mxu0 0
        %901 = vmatprep.subr.bf16.mxu0 0
        %902 = vmatpush2.bf16.msra.mxu0 0
        %903 = vmatprep.subr.bf16.mxu0 0
        %904 = vmatpush2.bf16.msra.mxu0 0
        %905 = vmatprep.subr.bf16.mxu0 0
        %906 = vmatpush2.bf16.msra.mxu0 0
        %907 = vmatprep.subr.bf16.mxu0 0
        %908 = vmatpush2.bf16.msra.mxu0 0
        %909 = vmatprep.mubr.bf16.mxu0 0
        %910 = vmatmul.mubr.bf16.gmra.mxu0 %v873
        %v911 = vpop.f32.mrf.mxu0
        %v912 = vadd.f32 0.0, %v911
        %v913 = vpop.f32.mrf.mxu0
        %v914 = vadd.f32 0.0, %v913
        %v915 = vpop.f32.mrf.mxu0
        %v916 = vpop.f32.mrf.mxu0
        %917 = vdwg.mxu0
        %918 = vmatprep.subr.bf16.mxu0 %v467
        %919 = vmatpush1.bf16.msra.mxu0 %v466
        %920 = vmatprep.subr.bf16.mxu0 %v463
        %921 = vmatpush1.bf16.msra.mxu0 %v462
        %922 = vmatprep.subr.bf16.mxu0 %v459
        %923 = vmatpush1.bf16.msra.mxu0 %v458
        %924 = vmatprep.subr.bf16.mxu0 %v455
        %925 = vmatpush1.bf16.msra.mxu0 %v454
        %926 = vmatprep.subr.bf16.mxu0 %v451
        %927 = vmatpush1.bf16.msra.mxu0 %v450
        %928 = vmatprep.subr.bf16.mxu0 %v447
        %929 = vmatpush1.bf16.msra.mxu0 %v446
        %930 = vmatprep.subr.bf16.mxu0 %v443
        %931 = vmatpush1.bf16.msra.mxu0 %v442
        %932 = vmatprep.subr.bf16.mxu0 %v439
        %933 = vmatpush1.bf16.msra.mxu0 %v438
        %934 = vmatprep.subr.bf16.mxu0 0
        %935 = vmatpush2.bf16.msra.mxu0 0
        %936 = vmatprep.subr.bf16.mxu0 0
        %937 = vmatpush2.bf16.msra.mxu0 0
        %938 = vmatprep.subr.bf16.mxu0 0
        %939 = vmatpush2.bf16.msra.mxu0 0
        %940 = vmatprep.subr.bf16.mxu0 0
        %941 = vmatpush2.bf16.msra.mxu0 0
        %942 = vmatprep.subr.bf16.mxu0 0
        %943 = vmatpush2.bf16.msra.mxu0 0
        %944 = vmatprep.subr.bf16.mxu0 0
        %945 = vmatpush2.bf16.msra.mxu0 0
        %946 = vmatprep.subr.bf16.mxu0 0
        %947 = vmatpush2.bf16.msra.mxu0 0
        %948 = vmatprep.subr.bf16.mxu0 0
        %949 = vmatpush2.bf16.msra.mxu0 0
        %950 = vmatprep.mubr.bf16.mxu0 0
        %951 = vmatmul.mubr.bf16.gmra.mxu0 %v873
        %v952 = vpop.f32.mrf.mxu0
        %v953 = vadd.f32 0.0, %v952
        %v954 = vpop.f32.mrf.mxu0
        %v955 = vadd.f32 0.0, %v954
        %v956 = vpop.f32.mrf.mxu0
        %v957 = vpop.f32.mrf.mxu0
        %958 = vdwg.mxu0
        %959 = vmatprep.subr.bf16.mxu0 %v707
        %960 = vmatpush1.bf16.msra.mxu0 %v706
        %961 = vmatprep.subr.bf16.mxu0 %v703
        %962 = vmatpush1.bf16.msra.mxu0 %v702
        %963 = vmatprep.subr.bf16.mxu0 %v699
        %964 = vmatpush1.bf16.msra.mxu0 %v698
        %965 = vmatprep.subr.bf16.mxu0 %v695
        %966 = vmatpush1.bf16.msra.mxu0 %v694
        %967 = vmatprep.subr.bf16.mxu0 %v691
        %968 = vmatpush1.bf16.msra.mxu0 %v690
        %969 = vmatprep.subr.bf16.mxu0 %v687
        %970 = vmatpush1.bf16.msra.mxu0 %v686
        %971 = vmatprep.subr.bf16.mxu0 %v683
        %972 = vmatpush1.bf16.msra.mxu0 %v682
        %973 = vmatprep.subr.bf16.mxu0 %v679
        %974 = vmatpush1.bf16.msra.mxu0 %v678
        %975 = vmatprep.subr.bf16.mxu0 0
        %976 = vmatpush2.bf16.msra.mxu0 0
        %977 = vmatprep.subr.bf16.mxu0 0
        %978 = vmatpush2.bf16.msra.mxu0 0
        %979 = vmatprep.subr.bf16.mxu0 0
        %980 = vmatpush2.bf16.msra.mxu0 0
        %981 = vmatprep.subr.bf16.mxu0 0
        %982 = vmatpush2.bf16.msra.mxu0 0
        %983 = vmatprep.subr.bf16.mxu0 0
        %984 = vmatpush2.bf16.msra.mxu0 0
        %985 = vmatprep.subr.bf16.mxu0 0
        %986 = vmatpush2.bf16.msra.mxu0 0
        %987 = vmatprep.subr.bf16.mxu0 0
        %988 = vmatpush2.bf16.msra.mxu0 0
        %989 = vmatprep.subr.bf16.mxu0 0
        %990 = vmatpush2.bf16.msra.mxu0 0
        %991 = vmatprep.mubr.bf16.mxu0 0
        %992 = vmatmul.mubr.bf16.gmra.mxu0 %v876
        %v993 = vpop.f32.mrf.mxu0
        %v994 = vadd.f32 %v912, %v993
        %v995 = vpop.f32.mrf.mxu0
        %v996 = vadd.f32 %v914, %v995
        %v997 = vpop.f32.mrf.mxu0
        %v998 = vpop.f32.mrf.mxu0
        %999 = vdwg.mxu0
        %1000 = vmatprep.subr.bf16.mxu0 %v709
        %1001 = vmatpush1.bf16.msra.mxu0 %v708
        %1002 = vmatprep.subr.bf16.mxu0 %v705
        %1003 = vmatpush1.bf16.msra.mxu0 %v704
        %1004 = vmatprep.subr.bf16.mxu0 %v701
        %1005 = vmatpush1.bf16.msra.mxu0 %v700
        %1006 = vmatprep.subr.bf16.mxu0 %v697
        %1007 = vmatpush1.bf16.msra.mxu0 %v696
        %1008 = vmatprep.subr.bf16.mxu0 %v693
        %1009 = vmatpush1.bf16.msra.mxu0 %v692
        %1010 = vmatprep.subr.bf16.mxu0 %v689
        %1011 = vmatpush1.bf16.msra.mxu0 %v688
        %1012 = vmatprep.subr.bf16.mxu0 %v685
        %1013 = vmatpush1.bf16.msra.mxu0 %v684
        %1014 = vmatprep.subr.bf16.mxu0 %v681
        %1015 = vmatpush1.bf16.msra.mxu0 %v680
        %1016 = vmatprep.subr.bf16.mxu0 0
        %1017 = vmatpush2.bf16.msra.mxu0 0
        %1018 = vmatprep.subr.bf16.mxu0 0
        %1019 = vmatpush2.bf16.msra.mxu0 0
        %1020 = vmatprep.subr.bf16.mxu0 0
        %1021 = vmatpush2.bf16.msra.mxu0 0
        %1022 = vmatprep.subr.bf16.mxu0 0
        %1023 = vmatpush2.bf16.msra.mxu0 0
        %1024 = vmatprep.subr.bf16.mxu0 0
        %1025 = vmatpush2.bf16.msra.mxu0 0
        %1026 = vmatprep.subr.bf16.mxu0 0
        %1027 = vmatpush2.bf16.msra.mxu0 0
        %1028 = vmatprep.subr.bf16.mxu0 0
        %1029 = vmatpush2.bf16.msra.mxu0 0
        %1030 = vmatprep.subr.bf16.mxu0 0
        %1031 = vmatpush2.bf16.msra.mxu0 0
        %1032 = vmatprep.mubr.bf16.mxu0 0
        %1033 = vmatmul.mubr.bf16.gmra.mxu0 %v876
        %v1034 = vpop.f32.mrf.mxu0
        %v1035 = vadd.f32 %v953, %v1034
        %v1036 = vpop.f32.mrf.mxu0
        %v1037 = vadd.f32 %v955, %v1036
        %v1038 = vpop.f32.mrf.mxu0
        %v1039 = vpop.f32.mrf.mxu0
        %1040 = vdwg.mxu0
        %v1041 = vadd.f32 %v994, %v828
        %v1042 = vadd.f32 %v996, %v832
        %v1043 = vadd.f32 %v1035, %v836
        %v1044 = vadd.f32 %v1037, %v840
        %v1045 = vxor.u32 %v1041, 2147483648
        %v1046 = vmul.f32 %v1045, 1.442695
        %v1047 = vpow.pop %v1046
        %v1048 = vadd.f32 %v1047, 1.0
        %v1049 = vrcp.pop %v1048
        %v1050 = vmul.f32 1.0, %v1049
        %v1051 = vxor.u32 %v1042, 2147483648
        %v1052 = vmul.f32 %v1051, 1.442695
        %v1053 = vpow.pop %v1052
        %v1054 = vadd.f32 %v1053, 1.0
        %v1055 = vrcp.pop %v1054
        %v1056 = vmul.f32 1.0, %v1055
        %v1057 = vtanh.pop %v1043
        %v1058 = vxor.u32 %v1044, 2147483648
        %v1059 = vmul.f32 %v1058, 1.442695
        %v1060 = vpow.pop %v1059
        %v1061 = vadd.f32 %v1060, 1.0
        %v1062 = vrcp.pop %v1061
        %v1063 = vmul.f32 1.0, %v1062
        %v1064 = vmul.f32 %v1056, %v870
        %v1065 = vmul.f32 %v1050, %v1057
        %v1066 = vadd.f32 %v1064, %v1065
        %v1067 = vtanh.pop %v1066
        %v1068 = vmul.f32 %v1063, %v1067
        %v1069 = vpack.c.bf16 %v1068, %v1068
        %s1070 = scalar_lea.vmem %s261, 4 [#allocation10]
        %1071 = vst [vmem:[%s1070] sm:$0xf] %v1069
        %s1072 = scalar_lea.vmem %s229, 8 [#allocation4]
        %v1073 = vld [vmem:[%s1072] sm:$0xf]
        %1074 = vmatprep.subr.bf16.mxu0 %v465
        %1075 = vmatpush1.bf16.msra.mxu0 %v464
        %1076 = vmatprep.subr.bf16.mxu0 %v461
        %1077 = vmatpush1.bf16.msra.mxu0 %v460
        %1078 = vmatprep.subr.bf16.mxu0 %v457
        %1079 = vmatpush1.bf16.msra.mxu0 %v456
        %1080 = vmatprep.subr.bf16.mxu0 %v453
        %1081 = vmatpush1.bf16.msra.mxu0 %v452
        %1082 = vmatprep.subr.bf16.mxu0 %v449
        %1083 = vmatpush1.bf16.msra.mxu0 %v448
        %1084 = vmatprep.subr.bf16.mxu0 %v445
        %1085 = vmatpush1.bf16.msra.mxu0 %v444
        %1086 = vmatprep.subr.bf16.mxu0 %v441
        %1087 = vmatpush1.bf16.msra.mxu0 %v440
        %1088 = vmatprep.subr.bf16.mxu0 %v437
        %1089 = vmatpush1.bf16.msra.mxu0 %v436
        %1090 = vmatprep.subr.bf16.mxu0 0
        %1091 = vmatpush2.bf16.msra.mxu0 0
        %1092 = vmatprep.subr.bf16.mxu0 0
        %1093 = vmatpush2.bf16.msra.mxu0 0
        %1094 = vmatprep.subr.bf16.mxu0 0
        %1095 = vmatpush2.bf16.msra.mxu0 0
        %1096 = vmatprep.subr.bf16.mxu0 0
        %1097 = vmatpush2.bf16.msra.mxu0 0
        %1098 = vmatprep.subr.bf16.mxu0 0
        %1099 = vmatpush2.bf16.msra.mxu0 0
        %1100 = vmatprep.subr.bf16.mxu0 0
        %1101 = vmatpush2.bf16.msra.mxu0 0
        %1102 = vmatprep.subr.bf16.mxu0 0
        %1103 = vmatpush2.bf16.msra.mxu0 0
        %1104 = vmatprep.subr.bf16.mxu0 0
        %1105 = vmatpush2.bf16.msra.mxu0 0
        %1106 = vmatprep.mubr.bf16.mxu0 0
        %1107 = vmatmul.mubr.bf16.gmra.mxu0 %v1069
        %v1108 = vpop.f32.mrf.mxu0
        %v1109 = vadd.f32 0.0, %v1108
        %v1110 = vpop.f32.mrf.mxu0
        %v1111 = vadd.f32 0.0, %v1110
        %v1112 = vpop.f32.mrf.mxu0
        %v1113 = vpop.f32.mrf.mxu0
        %1114 = vdwg.mxu0
        %1115 = vmatprep.subr.bf16.mxu0 %v467
        %1116 = vmatpush1.bf16.msra.mxu0 %v466
        %1117 = vmatprep.subr.bf16.mxu0 %v463
        %1118 = vmatpush1.bf16.msra.mxu0 %v462
        %1119 = vmatprep.subr.bf16.mxu0 %v459
        %1120 = vmatpush1.bf16.msra.mxu0 %v458
        %1121 = vmatprep.subr.bf16.mxu0 %v455
        %1122 = vmatpush1.bf16.msra.mxu0 %v454
        %1123 = vmatprep.subr.bf16.mxu0 %v451
        %1124 = vmatpush1.bf16.msra.mxu0 %v450
        %1125 = vmatprep.subr.bf16.mxu0 %v447
        %1126 = vmatpush1.bf16.msra.mxu0 %v446
        %1127 = vmatprep.subr.bf16.mxu0 %v443
        %1128 = vmatpush1.bf16.msra.mxu0 %v442
        %1129 = vmatprep.subr.bf16.mxu0 %v439
        %1130 = vmatpush1.bf16.msra.mxu0 %v438
        %1131 = vmatprep.subr.bf16.mxu0 0
        %1132 = vmatpush2.bf16.msra.mxu0 0
        %1133 = vmatprep.subr.bf16.mxu0 0
        %1134 = vmatpush2.bf16.msra.mxu0 0
        %1135 = vmatprep.subr.bf16.mxu0 0
        %1136 = vmatpush2.bf16.msra.mxu0 0
        %1137 = vmatprep.subr.bf16.mxu0 0
        %1138 = vmatpush2.bf16.msra.mxu0 0
        %1139 = vmatprep.subr.bf16.mxu0 0
        %1140 = vmatpush2.bf16.msra.mxu0 0
        %1141 = vmatprep.subr.bf16.mxu0 0
        %1142 = vmatpush2.bf16.msra.mxu0 0
        %1143 = vmatprep.subr.bf16.mxu0 0
        %1144 = vmatpush2.bf16.msra.mxu0 0
        %1145 = vmatprep.subr.bf16.mxu0 0
        %1146 = vmatpush2.bf16.msra.mxu0 0
        %1147 = vmatprep.mubr.bf16.mxu0 0
        %1148 = vmatmul.mubr.bf16.gmra.mxu0 %v1069
        %v1149 = vpop.f32.mrf.mxu0
        %v1150 = vadd.f32 0.0, %v1149
        %v1151 = vpop.f32.mrf.mxu0
        %v1152 = vadd.f32 0.0, %v1151
        %v1153 = vpop.f32.mrf.mxu0
        %v1154 = vpop.f32.mrf.mxu0
        %1155 = vdwg.mxu0
        %1156 = vmatprep.subr.bf16.mxu0 %v707
        %1157 = vmatpush1.bf16.msra.mxu0 %v706
        %1158 = vmatprep.subr.bf16.mxu0 %v703
        %1159 = vmatpush1.bf16.msra.mxu0 %v702
        %1160 = vmatprep.subr.bf16.mxu0 %v699
        %1161 = vmatpush1.bf16.msra.mxu0 %v698
        %1162 = vmatprep.subr.bf16.mxu0 %v695
        %1163 = vmatpush1.bf16.msra.mxu0 %v694
        %1164 = vmatprep.subr.bf16.mxu0 %v691
        %1165 = vmatpush1.bf16.msra.mxu0 %v690
        %1166 = vmatprep.subr.bf16.mxu0 %v687
        %1167 = vmatpush1.bf16.msra.mxu0 %v686
        %1168 = vmatprep.subr.bf16.mxu0 %v683
        %1169 = vmatpush1.bf16.msra.mxu0 %v682
        %1170 = vmatprep.subr.bf16.mxu0 %v679
        %1171 = vmatpush1.bf16.msra.mxu0 %v678
        %1172 = vmatprep.subr.bf16.mxu0 0
        %1173 = vmatpush2.bf16.msra.mxu0 0
        %1174 = vmatprep.subr.bf16.mxu0 0
        %1175 = vmatpush2.bf16.msra.mxu0 0
        %1176 = vmatprep.subr.bf16.mxu0 0
        %1177 = vmatpush2.bf16.msra.mxu0 0
        %1178 = vmatprep.subr.bf16.mxu0 0
        %1179 = vmatpush2.bf16.msra.mxu0 0
        %1180 = vmatprep.subr.bf16.mxu0 0
        %1181 = vmatpush2.bf16.msra.mxu0 0
        %1182 = vmatprep.subr.bf16.mxu0 0
        %1183 = vmatpush2.bf16.msra.mxu0 0
        %1184 = vmatprep.subr.bf16.mxu0 0
        %1185 = vmatpush2.bf16.msra.mxu0 0
        %1186 = vmatprep.subr.bf16.mxu0 0
        %1187 = vmatpush2.bf16.msra.mxu0 0
        %1188 = vmatprep.mubr.bf16.mxu0 0
        %1189 = vmatmul.mubr.bf16.gmra.mxu0 %v1073
        %v1190 = vpop.f32.mrf.mxu0
        %v1191 = vadd.f32 %v1109, %v1190
        %v1192 = vpop.f32.mrf.mxu0
        %v1193 = vadd.f32 %v1111, %v1192
        %v1194 = vpop.f32.mrf.mxu0
        %v1195 = vpop.f32.mrf.mxu0
        %1196 = vdwg.mxu0
        %1197 = vmatprep.subr.bf16.mxu0 %v709
        %1198 = vmatpush1.bf16.msra.mxu0 %v708
        %1199 = vmatprep.subr.bf16.mxu0 %v705
        %1200 = vmatpush1.bf16.msra.mxu0 %v704
        %1201 = vmatprep.subr.bf16.mxu0 %v701
        %1202 = vmatpush1.bf16.msra.mxu0 %v700
        %1203 = vmatprep.subr.bf16.mxu0 %v697
        %1204 = vmatpush1.bf16.msra.mxu0 %v696
        %1205 = vmatprep.subr.bf16.mxu0 %v693
        %1206 = vmatpush1.bf16.msra.mxu0 %v692
        %1207 = vmatprep.subr.bf16.mxu0 %v689
        %1208 = vmatpush1.bf16.msra.mxu0 %v688
        %1209 = vmatprep.subr.bf16.mxu0 %v685
        %1210 = vmatpush1.bf16.msra.mxu0 %v684
        %1211 = vmatprep.subr.bf16.mxu0 %v681
        %1212 = vmatpush1.bf16.msra.mxu0 %v680
        %1213 = vmatprep.subr.bf16.mxu0 0
        %1214 = vmatpush2.bf16.msra.mxu0 0
        %1215 = vmatprep.subr.bf16.mxu0 0
        %1216 = vmatpush2.bf16.msra.mxu0 0
        %1217 = vmatprep.subr.bf16.mxu0 0
        %1218 = vmatpush2.bf16.msra.mxu0 0
        %1219 = vmatprep.subr.bf16.mxu0 0
        %1220 = vmatpush2.bf16.msra.mxu0 0
        %1221 = vmatprep.subr.bf16.mxu0 0
        %1222 = vmatpush2.bf16.msra.mxu0 0
        %1223 = vmatprep.subr.bf16.mxu0 0
        %1224 = vmatpush2.bf16.msra.mxu0 0
        %1225 = vmatprep.subr.bf16.mxu0 0
        %1226 = vmatpush2.bf16.msra.mxu0 0
        %1227 = vmatprep.subr.bf16.mxu0 0
        %1228 = vmatpush2.bf16.msra.mxu0 0
        %1229 = vmatprep.mubr.bf16.mxu0 0
        %1230 = vmatmul.mubr.bf16.gmra.mxu0 %v1073
        %v1231 = vpop.f32.mrf.mxu0
        %v1232 = vadd.f32 %v1150, %v1231
        %v1233 = vpop.f32.mrf.mxu0
        %v1234 = vadd.f32 %v1152, %v1233
        %v1235 = vpop.f32.mrf.mxu0
        %v1236 = vpop.f32.mrf.mxu0
        %1237 = vdwg.mxu0
        %v1238 = vadd.f32 %v1191, %v828
        %v1239 = vadd.f32 %v1193, %v832
        %v1240 = vadd.f32 %v1232, %v836
        %v1241 = vadd.f32 %v1234, %v840
        %v1242 = vxor.u32 %v1238, 2147483648
        %v1243 = vmul.f32 %v1242, 1.442695
        %v1244 = vpow.pop %v1243
        %v1245 = vadd.f32 %v1244, 1.0
        %v1246 = vrcp.pop %v1245
        %v1247 = vmul.f32 1.0, %v1246
        %v1248 = vxor.u32 %v1239, 2147483648
        %v1249 = vmul.f32 %v1248, 1.442695
        %v1250 = vpow.pop %v1249
        %v1251 = vadd.f32 %v1250, 1.0
        %v1252 = vrcp.pop %v1251
        %v1253 = vmul.f32 1.0, %v1252
        %v1254 = vtanh.pop %v1240
        %v1255 = vxor.u32 %v1241, 2147483648
        %v1256 = vmul.f32 %v1255, 1.442695
        %v1257 = vpow.pop %v1256
        %v1258 = vadd.f32 %v1257, 1.0
        %v1259 = vrcp.pop %v1258
        %v1260 = vmul.f32 1.0, %v1259
        %v1261 = vmul.f32 %v1253, %v1066
        %v1262 = vmul.f32 %v1247, %v1254
        %v1263 = vadd.f32 %v1261, %v1262
        %v1264 = vtanh.pop %v1263
        %v1265 = vmul.f32 %v1260, %v1264
        %v1266 = vpack.c.bf16 %v1265, %v1265
        %s1267 = scalar_lea.vmem %s261, 8 [#allocation10]
        %1268 = vst [vmem:[%s1267] sm:$0xf] %v1266
        %s1269 = scalar_lea.vmem %s229, 12 [#allocation4]
        %v1270 = vld [vmem:[%s1269] sm:$0xf]
        %1271 = vmatprep.subr.bf16.mxu0 %v465
        %1272 = vmatpush1.bf16.msra.mxu0 %v464
        %1273 = vmatprep.subr.bf16.mxu0 %v461
        %1274 = vmatpush1.bf16.msra.mxu0 %v460
        %1275 = vmatprep.subr.bf16.mxu0 %v457
        %1276 = vmatpush1.bf16.msra.mxu0 %v456
        %1277 = vmatprep.subr.bf16.mxu0 %v453
        %1278 = vmatpush1.bf16.msra.mxu0 %v452
        %1279 = vmatprep.subr.bf16.mxu0 %v449
        %1280 = vmatpush1.bf16.msra.mxu0 %v448
        %1281 = vmatprep.subr.bf16.mxu0 %v445
        %1282 = vmatpush1.bf16.msra.mxu0 %v444
        %1283 = vmatprep.subr.bf16.mxu0 %v441
        %1284 = vmatpush1.bf16.msra.mxu0 %v440
        %1285 = vmatprep.subr.bf16.mxu0 %v437
        %1286 = vmatpush1.bf16.msra.mxu0 %v436
        %1287 = vmatprep.subr.bf16.mxu0 0
        %1288 = vmatpush2.bf16.msra.mxu0 0
        %1289 = vmatprep.subr.bf16.mxu0 0
        %1290 = vmatpush2.bf16.msra.mxu0 0
        %1291 = vmatprep.subr.bf16.mxu0 0
        %1292 = vmatpush2.bf16.msra.mxu0 0
        %1293 = vmatprep.subr.bf16.mxu0 0
        %1294 = vmatpush2.bf16.msra.mxu0 0
        %1295 = vmatprep.subr.bf16.mxu0 0
        %1296 = vmatpush2.bf16.msra.mxu0 0
        %1297 = vmatprep.subr.bf16.mxu0 0
        %1298 = vmatpush2.bf16.msra.mxu0 0
        %1299 = vmatprep.subr.bf16.mxu0 0
        %1300 = vmatpush2.bf16.msra.mxu0 0
        %1301 = vmatprep.subr.bf16.mxu0 0
        %1302 = vmatpush2.bf16.msra.mxu0 0
        %1303 = vmatprep.mubr.bf16.mxu0 0
        %1304 = vmatmul.mubr.bf16.gmra.mxu0 %v1266
        %v1305 = vpop.f32.mrf.mxu0
        %v1306 = vadd.f32 0.0, %v1305
        %v1307 = vpop.f32.mrf.mxu0
        %v1308 = vadd.f32 0.0, %v1307
        %v1309 = vpop.f32.mrf.mxu0
        %v1310 = vpop.f32.mrf.mxu0
        %1311 = vdwg.mxu0
        %1312 = vmatprep.subr.bf16.mxu0 %v467
        %1313 = vmatpush1.bf16.msra.mxu0 %v466
        %1314 = vmatprep.subr.bf16.mxu0 %v463
        %1315 = vmatpush1.bf16.msra.mxu0 %v462
        %1316 = vmatprep.subr.bf16.mxu0 %v459
        %1317 = vmatpush1.bf16.msra.mxu0 %v458
        %1318 = vmatprep.subr.bf16.mxu0 %v455
        %1319 = vmatpush1.bf16.msra.mxu0 %v454
        %1320 = vmatprep.subr.bf16.mxu0 %v451
        %1321 = vmatpush1.bf16.msra.mxu0 %v450
        %1322 = vmatprep.subr.bf16.mxu0 %v447
        %1323 = vmatpush1.bf16.msra.mxu0 %v446
        %1324 = vmatprep.subr.bf16.mxu0 %v443
        %1325 = vmatpush1.bf16.msra.mxu0 %v442
        %1326 = vmatprep.subr.bf16.mxu0 %v439
        %1327 = vmatpush1.bf16.msra.mxu0 %v438
        %1328 = vmatprep.subr.bf16.mxu0 0
        %1329 = vmatpush2.bf16.msra.mxu0 0
        %1330 = vmatprep.subr.bf16.mxu0 0
        %1331 = vmatpush2.bf16.msra.mxu0 0
        %1332 = vmatprep.subr.bf16.mxu0 0
        %1333 = vmatpush2.bf16.msra.mxu0 0
        %1334 = vmatprep.subr.bf16.mxu0 0
        %1335 = vmatpush2.bf16.msra.mxu0 0
        %1336 = vmatprep.subr.bf16.mxu0 0
        %1337 = vmatpush2.bf16.msra.mxu0 0
        %1338 = vmatprep.subr.bf16.mxu0 0
        %1339 = vmatpush2.bf16.msra.mxu0 0
        %1340 = vmatprep.subr.bf16.mxu0 0
        %1341 = vmatpush2.bf16.msra.mxu0 0
        %1342 = vmatprep.subr.bf16.mxu0 0
        %1343 = vmatpush2.bf16.msra.mxu0 0
        %1344 = vmatprep.mubr.bf16.mxu0 0
        %1345 = vmatmul.mubr.bf16.gmra.mxu0 %v1266
        %v1346 = vpop.f32.mrf.mxu0
        %v1347 = vadd.f32 0.0, %v1346
        %v1348 = vpop.f32.mrf.mxu0
        %v1349 = vadd.f32 0.0, %v1348
        %v1350 = vpop.f32.mrf.mxu0
        %v1351 = vpop.f32.mrf.mxu0
        %1352 = vdwg.mxu0
        %1353 = vmatprep.subr.bf16.mxu0 %v707
        %1354 = vmatpush1.bf16.msra.mxu0 %v706
        %1355 = vmatprep.subr.bf16.mxu0 %v703
        %1356 = vmatpush1.bf16.msra.mxu0 %v702
        %1357 = vmatprep.subr.bf16.mxu0 %v699
        %1358 = vmatpush1.bf16.msra.mxu0 %v698
        %1359 = vmatprep.subr.bf16.mxu0 %v695
        %1360 = vmatpush1.bf16.msra.mxu0 %v694
        %1361 = vmatprep.subr.bf16.mxu0 %v691
        %1362 = vmatpush1.bf16.msra.mxu0 %v690
        %1363 = vmatprep.subr.bf16.mxu0 %v687
        %1364 = vmatpush1.bf16.msra.mxu0 %v686
        %1365 = vmatprep.subr.bf16.mxu0 %v683
        %1366 = vmatpush1.bf16.msra.mxu0 %v682
        %1367 = vmatprep.subr.bf16.mxu0 %v679
        %1368 = vmatpush1.bf16.msra.mxu0 %v678
        %1369 = vmatprep.subr.bf16.mxu0 0
        %1370 = vmatpush2.bf16.msra.mxu0 0
        %1371 = vmatprep.subr.bf16.mxu0 0
        %1372 = vmatpush2.bf16.msra.mxu0 0
        %1373 = vmatprep.subr.bf16.mxu0 0
        %1374 = vmatpush2.bf16.msra.mxu0 0
        %1375 = vmatprep.subr.bf16.mxu0 0
        %1376 = vmatpush2.bf16.msra.mxu0 0
        %1377 = vmatprep.subr.bf16.mxu0 0
        %1378 = vmatpush2.bf16.msra.mxu0 0
        %1379 = vmatprep.subr.bf16.mxu0 0
        %1380 = vmatpush2.bf16.msra.mxu0 0
        %1381 = vmatprep.subr.bf16.mxu0 0
        %1382 = vmatpush2.bf16.msra.mxu0 0
        %1383 = vmatprep.subr.bf16.mxu0 0
        %1384 = vmatpush2.bf16.msra.mxu0 0
        %1385 = vmatprep.mubr.bf16.mxu0 0
        %1386 = vmatmul.mubr.bf16.gmra.mxu0 %v1270
        %v1387 = vpop.f32.mrf.mxu0
        %v1388 = vadd.f32 %v1306, %v1387
        %v1389 = vpop.f32.mrf.mxu0
        %v1390 = vadd.f32 %v1308, %v1389
        %v1391 = vpop.f32.mrf.mxu0
        %v1392 = vpop.f32.mrf.mxu0
        %1393 = vdwg.mxu0
        %1394 = vmatprep.subr.bf16.mxu0 %v709
        %1395 = vmatpush1.bf16.msra.mxu0 %v708
        %1396 = vmatprep.subr.bf16.mxu0 %v705
        %1397 = vmatpush1.bf16.msra.mxu0 %v704
        %1398 = vmatprep.subr.bf16.mxu0 %v701
        %1399 = vmatpush1.bf16.msra.mxu0 %v700
        %1400 = vmatprep.subr.bf16.mxu0 %v697
        %1401 = vmatpush1.bf16.msra.mxu0 %v696
        %1402 = vmatprep.subr.bf16.mxu0 %v693
        %1403 = vmatpush1.bf16.msra.mxu0 %v692
        %1404 = vmatprep.subr.bf16.mxu0 %v689
        %1405 = vmatpush1.bf16.msra.mxu0 %v688
        %1406 = vmatprep.subr.bf16.mxu0 %v685
        %1407 = vmatpush1.bf16.msra.mxu0 %v684
        %1408 = vmatprep.subr.bf16.mxu0 %v681
        %1409 = vmatpush1.bf16.msra.mxu0 %v680
        %1410 = vmatprep.subr.bf16.mxu0 0
        %1411 = vmatpush2.bf16.msra.mxu0 0
        %1412 = vmatprep.subr.bf16.mxu0 0
        %1413 = vmatpush2.bf16.msra.mxu0 0
        %1414 = vmatprep.subr.bf16.mxu0 0
        %1415 = vmatpush2.bf16.msra.mxu0 0
        %1416 = vmatprep.subr.bf16.mxu0 0
        %1417 = vmatpush2.bf16.msra.mxu0 0
        %1418 = vmatprep.subr.bf16.mxu0 0
        %1419 = vmatpush2.bf16.msra.mxu0 0
        %1420 = vmatprep.subr.bf16.mxu0 0
        %1421 = vmatpush2.bf16.msra.mxu0 0
        %1422 = vmatprep.subr.bf16.mxu0 0
        %1423 = vmatpush2.bf16.msra.mxu0 0
        %1424 = vmatprep.subr.bf16.mxu0 0
        %1425 = vmatpush2.bf16.msra.mxu0 0
        %1426 = vmatprep.mubr.bf16.mxu0 0
        %1427 = vmatmul.mubr.bf16.gmra.mxu0 %v1270
        %v1428 = vpop.f32.mrf.mxu0
        %v1429 = vadd.f32 %v1347, %v1428
        %v1430 = vpop.f32.mrf.mxu0
        %v1431 = vadd.f32 %v1349, %v1430
        %v1432 = vpop.f32.mrf.mxu0
        %v1433 = vpop.f32.mrf.mxu0
        %1434 = vdwg.mxu0
        %v1435 = vadd.f32 %v1388, %v828
        %v1436 = vadd.f32 %v1390, %v832
        %v1437 = vadd.f32 %v1429, %v836
        %v1438 = vadd.f32 %v1431, %v840
        %v1439 = vxor.u32 %v1435, 2147483648
        %v1440 = vmul.f32 %v1439, 1.442695
        %v1441 = vpow.pop %v1440
        %v1442 = vadd.f32 %v1441, 1.0
        %v1443 = vrcp.pop %v1442
        %v1444 = vmul.f32 1.0, %v1443
        %v1445 = vxor.u32 %v1436, 2147483648
        %v1446 = vmul.f32 %v1445, 1.442695
        %v1447 = vpow.pop %v1446
        %v1448 = vadd.f32 %v1447, 1.0
        %v1449 = vrcp.pop %v1448
        %v1450 = vmul.f32 1.0, %v1449
        %v1451 = vtanh.pop %v1437
        %v1452 = vxor.u32 %v1438, 2147483648
        %v1453 = vmul.f32 %v1452, 1.442695
        %v1454 = vpow.pop %v1453
        %v1455 = vadd.f32 %v1454, 1.0
        %v1456 = vrcp.pop %v1455
        %v1457 = vmul.f32 1.0, %v1456
        %v1458 = vmul.f32 %v1450, %v1263
        %v1459 = vmul.f32 %v1444, %v1451
        %v1460 = vadd.f32 %v1458, %v1459
        %v1461 = vtanh.pop %v1460
        %v1462 = vmul.f32 %v1457, %v1461
        %v1463 = vpack.c.bf16 %v1462, %v1462
        %s1464 = scalar_lea.vmem %s261, 12 [#allocation10]
        %1465 = vst [vmem:[%s1464] sm:$0xf] %v1463
        %1466 = vst [vmem:[#allocation2] sm:$0xff] %v1462
        %1467 = vst [vmem:[#allocation3] sm:$0xff] %v1460
        %s1468 = sand.u32 %s135, 1
        %s1469 = scalar_lea.sflag [#allocation6], %s1468
        %s1470 = sand.u32 %s135, 1
        %s1471 = smul.addr %s1470, 16
        %s1472 = scalar_lea.vmem [#allocation10], %s1471
        // Predicated region
        $region53: #{tpu_custom_call.1} parent=35 // pred_check
          %p1473 = pneg %p145
        $region54: #{tpu_custom_call.1} parent=35 // pred_check_branch
          %1475 = sbr.rel (%p1473) target = $region56
        $region55: #{tpu_custom_call.1} parent=35 // pred_region
          %s1476 = smul.u32 4, %s27
          %s1478 = ssub.s32 256, 256
          %1479 = vsyncadd %s1469, %s1478
          %s1480 = sadd.s32 %s26, %s1476
          %s1481 = smul.addr %s1480, 64
          %s1482 = scalar_lea.hbm %s4, %s1481
          %s1483 = sshll.u32 %s1472, 4
          %s1484 = int_to_ptr.vmem [resolvable:$true] %s1483
          %1489 = dma.vmem_to_hbm [thread:$0]  %s1484, 256, %s1482, %s1469, 64, 64, 4
        $region56: #{tpu_custom_call.1} parent=35 // pred_fallthru
          _
      $region36: #{tpu_custom_call.1} parent=5 // pred_fallthru
        _
      %p1490 = scmp.le.s32.totalorder 2, %s17
      // Predicated region
      $region57: #{tpu_custom_call.1} parent=5 // pred_check
        %p1491 = pneg %p1490
      $region58: #{tpu_custom_call.1} parent=5 // pred_check_branch
        %1493 = sbr.rel (%p1491) target = $region60
      $region59: #{tpu_custom_call.1} parent=5 // pred_region
        %s1494 = ssub.s32 %s17, 2
        // Predicated region
        $region61: #{tpu_custom_call.1} parent=59 // pred_check
          %p1495 = pneg %p151
        $region62: #{tpu_custom_call.1} parent=59 // pred_check_branch
          %1497 = sbr.rel (%p1495) target = $region64
        $region63: #{tpu_custom_call.1} parent=59 // pred_region
          %s1498 = sand.u32 %s136, 1
          %s1499 = scalar_lea.sflag [#allocation6], %s1498
          %s1500 = sand.u32 %s136, 1
          %s1501 = smul.addr %s1500, 16
          %s1502 = scalar_lea.vmem [#allocation10], %s1501
          %1503 = dma.done %s1499, 256
        $region64: #{tpu_custom_call.1} parent=59 // pred_fallthru
          _
      $region60: #{tpu_custom_call.1} parent=5 // pred_fallthru
        _
    $region6: #{tpu_custom_call.1} parent=1 // loop_footer
      %s21 = sadd.s32 1, %s17
    $region7: #{tpu_custom_call.1} parent=1 // loop_footer_branch
      %16 = sbr.rel target = $region3
    $region8: #{tpu_custom_call.1} parent=1 // loop_exit
      _
    %1504 = vsyncpa [#allocation5], 1
    %s1505 = scalar_lea.sflag [#allocation5], 1
    %1506 = vsyncpa %s1505, 1
    %1507 = vsyncpa [#allocation8], 1
    %1508 = vsyncpa [#allocation6], 1
    %s1509 = scalar_lea.sflag [#allocation6], 1
    %1510 = vsyncpa %s1509, 1

</llo_original>
